<compile_context>
chip_gen: v6e
topology: v6e:2x2x1
jax: 0.10.0
libtpu: 0.0.40
codegen_flags: <defaults>
</compile_context>

<pallas_src>
import functools

import jax
import jax.numpy as jnp
from jax import lax
from jax.experimental import pallas as pl
from jax.experimental.pallas import tpu as pltpu

EPS = 1e-5      # nn.BatchNorm2d default
LANE = 128      # TPU lane width


def _round_up(x, m):
    return (x + m - 1) // m * m


def _pick_tm(m):
    # Row-tile size: 256 rows (multiple of 8 sublanes / 16 for bf16) when possible.
    return 256 if m >= 256 else _round_up(m, 8)


# ----------------------------- Pallas kernels ------------------------------

def _conv_stats_kernel(p_ref, w_ref, y_ref, sum_ref, sq_ref):
    # One bf16 MXU matmul per M-tile, accumulated in f32.
    y = jnp.dot(p_ref[...], w_ref[...], preferred_element_type=jnp.float32)
    y_ref[...] = y

    # Per-channel sum / sum-of-squares accumulated across the whole M grid.
    # Zero-padded rows contribute nothing, so stats stay exact for the valid M.
    @pl.when(pl.program_id(0) == 0)
    def _init():
        sum_ref[...] = jnp.zeros_like(sum_ref)
        sq_ref[...] = jnp.zeros_like(sq_ref)

    sum_ref[...] += jnp.sum(y, axis=0, keepdims=True)
    sq_ref[...] += jnp.sum(y * y, axis=0, keepdims=True)


def conv_stats_pallas(patches, w, tm):
    """patches: (Mp, Kp) bf16; w: (Kp, Cp) bf16 -> (y f32 (Mp,Cp), sum, sumsq)."""
    mp, kp = patches.shape
    cp = w.shape[1]
    cost = pl.CostEstimate(
        flops=2 * mp * kp * cp,
        transcendentals=0,
        bytes_accessed=patches.size * 2 + w.size * 2 + mp * cp * 4 + 2 * cp * 4)
    return pl.pallas_call(
        _conv_stats_kernel,
        grid=(mp // tm,),
        in_specs=[pl.BlockSpec((tm, kp), lambda i: (i, 0)),
                  pl.BlockSpec((kp, cp), lambda i: (0, 0))],
        out_specs=[pl.BlockSpec((tm, cp), lambda i: (i, 0)),
                   pl.BlockSpec((1, cp), lambda i: (0, 0)),
                   pl.BlockSpec((1, cp), lambda i: (0, 0))],
        out_shape=[jax.ShapeDtypeStruct((mp, cp), jnp.float32),
                   jax.ShapeDtypeStruct((1, cp), jnp.float32),
                   jax.ShapeDtypeStruct((1, cp), jnp.float32)],
        compiler_params=pltpu.CompilerParams(
            dimension_semantics=("arbitrary",)),   # stats accumulate across tiles
        cost_estimate=cost,
    )(patches, w)


def _make_bn_tail_kernel(has_residual, apply_relu):
    def kernel(*refs):
        if has_residual:
            y_ref, sc_ref, sh_ref, r_ref, rsc_ref, rsh_ref, o_ref = refs
        else:
            y_ref, sc_ref, sh_ref, o_ref = refs
        out = y_ref[...] * sc_ref[...] + sh_ref[...]
        if has_residual:
            out = out + (r_ref[...] * rsc_ref[...] + rsh_ref[...])
        if apply_relu:
            out = jnp.maximum(out, 0.0)
        o_ref[...] = out.astype(o_ref.dtype)
    return kernel


def bn_tail_pallas(y, scale, shift, tm, residual=None, res_scale=None,
                   res_shift=None, apply_relu=True, out_dtype=jnp.float32):
    """Per-tile normalize (+ optional residual with its own scale/shift) + ReLU."""
    mp, cp = y.shape
    has_res = residual is not None
    row = pl.BlockSpec((tm, cp), lambda i: (i, 0))
    vec = pl.BlockSpec((1, cp), lambda i: (0, 0))
    args = [y, scale, shift]
    in_specs = [row, vec, vec]
    if has_res:
        args += [residual, res_scale, res_shift]
        in_specs += [row, vec, vec]
    return pl.pallas_call(
        _make_bn_tail_kernel(has_res, apply_relu),
        grid=(mp // tm,),
        in_specs=in_specs,
        out_specs=row,
        out_shape=jax.ShapeDtypeStruct((mp, cp), out_dtype),
        compiler_params=pltpu.CompilerParams(dimension_semantics=("parallel",)),
    )(*args)


# ------------------------------- JAX glue ----------------------------------

def extract_patches(x_nhwc, k, stride, dilation, pad):
    """im2col with taps folded into the channel axis -> (N*Ho*Wo, k*k*C)."""
    n, h, w, c = x_nhwc.shape
    xp = jnp.pad(x_nhwc, ((0, 0), (pad, pad), (pad, pad), (0, 0)))
    ho = (h + 2 * pad - dilation * (k - 1) - 1) // stride + 1
    wo = (w + 2 * pad - dilation * (k - 1) - 1) // stride + 1
    taps = []
    for kh in range(k):
        for kw in range(k):
            hs, ws = kh * dilation, kw * dilation
            taps.append(xp[:, hs:hs + stride * (ho - 1) + 1:stride,
                              ws:ws + stride * (wo - 1) + 1:stride, :])
    pat = jnp.concatenate(taps, axis=-1).reshape(n * ho * wo, k * k * c)
    return pat, (n, ho, wo)


def _conv_bn(patches, w2d, gamma, beta, m_valid, mp, tm, cpad):
    """Pad -> tiled matmul+stats kernel -> fold BN batch stats into (scale, shift)."""
    m, kdim = patches.shape
    kp = _round_up(kdim, LANE)
    p = jnp.pad(patches, ((0, mp - m), (0, kp - kdim))).astype(jnp.bfloat16)
    wp = jnp.pad(w2d, ((0, kp - kdim), (0, cpad - w2d.shape[1]))).astype(jnp.bfloat16)
    y, s, ss = conv_stats_pallas(p, wp, tm)
    c = gamma.shape[0]
    gp = jnp.pad(gamma, (0, cpad - c)).reshape(1, cpad)
    bp = jnp.pad(beta, (0, cpad - c)).reshape(1, cpad)
    mean = s / m_valid
    var = jnp.maximum(ss / m_valid - mean * mean, 0.0)   # biased batch variance
    scale = gp * lax.rsqrt(var + EPS)
    shift = bp - mean * scale
    return y, scale, shift


@functools.partial(jax.jit, static_argnums=(2, 3))
def basic_block_pallas(x_nchw, params, stride, dilation):
    n, cin, h, w = x_nchw.shape
    c = params["w1"].shape[-1]
    cpad = _round_up(c, LANE)
    x = jnp.transpose(x_nchw, (0, 2, 3, 1)).astype(jnp.float32)       # NHWC

    # conv1 -> bn1 -> relu   (intermediate stored bf16: it only feeds conv2's MXU)
    p1, (_, ho, wo) = extract_patches(x, 3, stride, dilation, dilation)
    m = p1.shape[0]
    tm = _pick_tm(m)
    mp = _round_up(m, tm)
    y1, sc1, sh1 = _conv_bn(p1, params["w1"].reshape(-1, c),
                            params["g1"], params["b1"], m, mp, tm, cpad)
    out1 = bn_tail_pallas(y1, sc1, sh1, tm, apply_relu=True,
                          out_dtype=jnp.bfloat16)
    out1_nhwc = out1[:m, :c].reshape(n, ho, wo, c)

    # downsample(x): 1x1 strided conv whose BN is folded into (scale, shift),
    # or identity (scale=1, shift=0).
    if "wd" in params:
        pd, _ = extract_patches(x, 1, stride, 1, 0)
        yr, scr, shr = _conv_bn(pd, params["wd"].reshape(cin, c),
                                params["gd"], params["bd"], m, mp, tm, cpad)
    else:
        yr = jnp.pad(x.reshape(m, cin), ((0, mp - m), (0, cpad - cin)))
        scr = jnp.ones((1, cpad), jnp.float32)
        shr = jnp.zeros((1, cpad), jnp.float32)

    # conv2 -> bn2 -> (+ residual-with-its-own-BN) -> relu, fused in the tail kernel
    p2, _ = extract_patches(out1_nhwc, 3, 1, dilation, dilation)
    y2, sc2, sh2 = _conv_bn(p2, params["w2"].reshape(-1, c),
                            params["g2"], params["b2"], m, mp, tm, cpad)
    out2 = bn_tail_pallas(y2, sc2, sh2, tm, residual=yr, res_scale=scr,
                          res_shift=shr, apply_relu=True, out_dtype=jnp.float32)
    out2 = out2[:m, :c].reshape(n, ho, wo, c)
    return jnp.transpose(out2, (0, 3, 1, 2))                           # NCHW


# --------------------------- pure-JAX references -----------------------------

def _ref_conv(x, w_hwio, stride, dilation, pad, mxu_bf16):
    if mxu_bf16:
        x = x.astype(jnp.bfloat16)
        w_hwio = w_hwio.astype(jnp.bfloat16)
        prec = None
    else:
        prec = lax.Precision.HIGHEST
    return lax.conv_general_dilated(
        x, w_hwio, window_strides=(stride, stride),
        padding=[(pad, pad), (pad, pad)], rhs_dilation=(dilation, dilation),
        dimension_numbers=("NHWC", "HWIO", "NHWC"),
        preferred_element_type=jnp.float32, precision=prec)


def _ref_bn(y, g, b):
    mean = jnp.mean(y, axis=(0, 1, 2))
    var = jnp.var(y, axis=(0, 1, 2))          # biased, as in BN training forward
    scale = g * lax.rsqrt(var + EPS)
    return y * scale + (b - mean * scale)


def basic_block_ref(x_nchw, params, stride, dilation, mxu_bf16=False):
    cin = x_nchw.shape[1]
    c = params["w1"].shape[-1]
    x = jnp.transpose(x_nchw, (0, 2, 3, 1)).astype(jnp.float32)
    w1 = params["w1"].reshape(3, 3, cin, c)
    w2 = params["w2"].reshape(3, 3, c, c)
    out = jnp.maximum(_ref_bn(_ref_conv(x, w1, stride, dilation, dilation, mxu_bf16),
                              params["g1"], params["b1"]), 0.0)
    out = _ref_bn(_ref_conv(out, w2, 1, dilation, dilation, mxu_bf16),
                  params["g2"], params["b2"])
    if "wd" in params:
        wd = params["wd"].reshape(1, 1, cin, c)
        res = _ref_bn(_ref_conv(x, wd, stride, 1, 0, mxu_bf16),
                      params["gd"], params["bd"])
    else:
        res = x
    return jnp.transpose(jnp.maximum(out + res, 0.0), (0, 3, 1, 2))


# ------------------------------ param init ---------------------------------

def init_params(key, cin, c, stride):
    ks = jax.random.split(key, 11)
    p = {
        "w1": 0.1 * jax.random.normal(ks[0], (9, cin, c), jnp.float32),
        "g1": 1.0 + 0.1 * jax.random.normal(ks[1], (c,), jnp.float32),
        "b1": 0.1 * jax.random.normal(ks[2], (c,), jnp.float32),
        "w2": 0.1 * jax.random.normal(ks[3], (9, c, c), jnp.float32),
        "g2": 1.0 + 0.1 * jax.random.normal(ks[4], (c,), jnp.float32),
        "b2": 0.1 * jax.random.normal(ks[5], (c,), jnp.float32),
    }
    if stride != 1 or cin != c:
        p["wd"] = 0.1 * jax.random.normal(ks[6], (1, cin, c), jnp.float32)
        p["gd"] = 1.0 + 0.1 * jax.random.normal(ks[7], (c,), jnp.float32)
        p["bd"] = 0.1 * jax.random.normal(ks[8], (c,), jnp.float32)
    return p


# ---------------------------------- main ------------------------------------

if __name__ == "__main__":
    key = jax.random.PRNGKey(0)

    # (in_channels, channels, stride, dilation)
    configs = [
        (4, 4, 1, 1),   # identity residual
        (4, 8, 2, 1),   # strided 1x1-conv downsample (stride + channel change)
        (4, 8, 1, 2),   # dilation=2, channel-change downsample
    ]

    for cin, c, stride, dilation in configs:
        kx, kp, key = jax.random.split(key, 3)
        x = jax.random.normal(kx, (2, cin, 16, 16), jnp.float32)      # NCHW
        params = init_params(kp, cin, c, stride)

        out = jax.block_until_ready(basic_block_pallas(x, params, stride, dilation))

        # Tight check vs a reference using the same bf16-MXU / f32-accumulate math.
        ref_bf16 = basic_block_ref(x, params, stride, dilation, mxu_bf16=True)
        # Looser check vs the pure-f32 (Precision.HIGHEST) reference of the module.
        ref_f32 = basic_block_ref(x, params, stride, dilation, mxu_bf16=False)

        assert out.shape == ref_f32.shape, (out.shape, ref_f32.shape)
        if not jnp.allclose(out, ref_bf16, atol=1e-2, rtol=1e-2):
            raise AssertionError(
                f"bf16-matched mismatch for cfg {(cin, c, stride, dilation)}: "
                f"max abs err {float(jnp.max(jnp.abs(out - ref_bf16)))}")
        if not jnp.allclose(out, ref_f32, atol=5e-2, rtol=5e-2):
            raise AssertionError(
                f"f32-ref mismatch for cfg {(cin, c, stride, dilation)}: "
                f"max abs err {float(jnp.max(jnp.abs(out - ref_f32)))}")

    print("KERNEL_OK")
</pallas_src>

<mosaic_0001>
module attributes {stable_mosaic.version = 11 : i64} {
  func.func @_conv_stats_kernel(%arg0: i32, %arg1: memref<256x128xbf16, #tpu.memory_space<vmem>>, %arg2: memref<128x128xbf16, #tpu.memory_space<vmem>>, %arg3: memref<256x128xf32, #tpu.memory_space<vmem>>, %arg4: memref<1x128xf32, #tpu.memory_space<vmem>>, %arg5: memref<1x128xf32, #tpu.memory_space<vmem>>) attributes {dimension_semantics = [#tpu.dimension_semantics<arbitrary>], iteration_bounds = array<i64: 2>, scalar_prefetch = 0 : i64, scratch_operands = 0 : i64, tpu.core_type = #tpu.core_type<tc>, window_params = [{transform_indices = @transform_0, window_bounds = array<i64: 256, 128>}, {pipeline_mode = #tpu.pipeline_mode<synchronous>, transform_indices = @transform_1, window_bounds = array<i64: 128, 128>}, {transform_indices = @transform_2, window_bounds = array<i64: 256, 128>}, {pipeline_mode = #tpu.pipeline_mode<synchronous>, transform_indices = @transform_3, window_bounds = array<i64: 1, 128>}, {pipeline_mode = #tpu.pipeline_mode<synchronous>, transform_indices = @transform_4, window_bounds = array<i64: 1, 128>}]} {
    %c0 = arith.constant 0 : index
    %c0_0 = arith.constant 0 : index
    %0 = vector.load %arg1[%c0, %c0_0] : memref<256x128xbf16, #tpu.memory_space<vmem>>, vector<256x128xbf16>
    %c0_1 = arith.constant 0 : index
    %c0_2 = arith.constant 0 : index
    %1 = vector.load %arg2[%c0_1, %c0_2] : memref<128x128xbf16, #tpu.memory_space<vmem>>, vector<128x128xbf16>
    %cst = arith.constant dense<0.000000e+00> : vector<256x128xf32>
    %2 = tpu.matmul %0, %1, %cst {dimension_numbers = #tpu.dot_dimension_numbers<[1], [0], [0], [1], [0, 0, 1, 1], [], []>} : vector<256x128xbf16>, vector<128x128xbf16>, vector<256x128xf32> -> vector<256x128xf32>
    %c0_3 = arith.constant 0 : index
    %c0_4 = arith.constant 0 : index
    %3 = vector.load %arg3[%c0_3, %c0_4] : memref<256x128xf32, #tpu.memory_space<vmem>>, vector<256x128xf32>
    tpu.vector_store %arg3[%c0_3, %c0_4], %2 {strides = array<i32>} : memref<256x128xf32, #tpu.memory_space<vmem>>, vector<256x128xf32>,
    %c0_i32 = arith.constant 0 : i32
    %4 = arith.cmpi eq, %arg0, %c0_i32 : i32
    %5 = arith.extui %4 : i1 to i32
    %c0_i32_5 = arith.constant 0 : i32
    %6 = arith.cmpi ne, %5, %c0_i32_5 : i32
    scf.if %6 {
      %cst_16 = arith.constant 0.000000e+00 : f32
      %18 = vector.broadcast %cst_16 : f32 to vector<1x128xf32>
      %c0_17 = arith.constant 0 : index
      %c0_18 = arith.constant 0 : index
      %19 = vector.load %arg4[%c0_17, %c0_18] : memref<1x128xf32, #tpu.memory_space<vmem>>, vector<1x128xf32>
      tpu.vector_store %arg4[%c0_17, %c0_18], %18 {strides = array<i32>} : memref<1x128xf32, #tpu.memory_space<vmem>>, vector<1x128xf32>,
      %cst_19 = arith.constant 0.000000e+00 : f32
      %20 = vector.broadcast %cst_19 : f32 to vector<1x128xf32>
      %c0_20 = arith.constant 0 : index
      %c0_21 = arith.constant 0 : index
      %21 = vector.load %arg5[%c0_20, %c0_21] : memref<1x128xf32, #tpu.memory_space<vmem>>, vector<1x128xf32>
      tpu.vector_store %arg5[%c0_20, %c0_21], %20 {strides = array<i32>} : memref<1x128xf32, #tpu.memory_space<vmem>>, vector<1x128xf32>,
    } else {
    }
    %c0_6 = arith.constant 0 : index
    %c0_7 = arith.constant 0 : index
    %7 = vector.load %arg4[%c0_6, %c0_7] : memref<1x128xf32, #tpu.memory_space<vmem>>, vector<1x128xf32>
    %cst_8 = arith.constant dense<0.000000e+00> : vector<128xf32>
    %8 = vector.multi_reduction <add>, %2, %cst_8 [0] : vector<256x128xf32> to vector<128xf32>
    %9 = vector.shape_cast %8 : vector<128xf32> to vector<1x128xf32>
    %10 = arith.addf %7, %9 : vector<1x128xf32>
    %c0_9 = arith.constant 0 : index
    %c0_10 = arith.constant 0 : index
    %11 = vector.load %arg4[%c0_9, %c0_10] : memref<1x128xf32, #tpu.memory_space<vmem>>, vector<1x128xf32>
    tpu.vector_store %arg4[%c0_9, %c0_10], %10 {strides = array<i32>} : memref<1x128xf32, #tpu.memory_space<vmem>>, vector<1x128xf32>,
    %c0_11 = arith.constant 0 : index
    %c0_12 = arith.constant 0 : index
    %12 = vector.load %arg5[%c0_11, %c0_12] : memref<1x128xf32, #tpu.memory_space<vmem>>, vector<1x128xf32>
    %13 = arith.mulf %2, %2 : vector<256x128xf32>
    %cst_13 = arith.constant dense<0.000000e+00> : vector<128xf32>
    %14 = vector.multi_reduction <add>, %13, %cst_13 [0] : vector<256x128xf32> to vector<128xf32>
    %15 = vector.shape_cast %14 : vector<128xf32> to vector<1x128xf32>
    %16 = arith.addf %12, %15 : vector<1x128xf32>
    %c0_14 = arith.constant 0 : index
    %c0_15 = arith.constant 0 : index
    %17 = vector.load %arg5[%c0_14, %c0_15] : memref<1x128xf32, #tpu.memory_space<vmem>>, vector<1x128xf32>
    tpu.vector_store %arg5[%c0_14, %c0_15], %16 {strides = array<i32>} : memref<1x128xf32, #tpu.memory_space<vmem>>, vector<1x128xf32>,
    return
  }
  func.func @transform_0(%arg0: i32) -> (i32, i32) {
    %c0_i32 = arith.constant 0 : i32
    %c0_i32_0 = arith.constant 0 : i32
    return %arg0, %c0_i32 : i32, i32
  }
  func.func @transform_1(%arg0: i32) -> (i32, i32) {
    %c0_i32 = arith.constant 0 : i32
    %c0_i32_0 = arith.constant 0 : i32
    %c0_i32_1 = arith.constant 0 : i32
    return %c0_i32, %c0_i32_0 : i32, i32
  }
  func.func @transform_2(%arg0: i32) -> (i32, i32) {
    %c0_i32 = arith.constant 0 : i32
    %c0_i32_0 = arith.constant 0 : i32
    return %arg0, %c0_i32 : i32, i32
  }
  func.func @transform_3(%arg0: i32) -> (i32, i32) {
    %c0_i32 = arith.constant 0 : i32
    %c0_i32_0 = arith.constant 0 : i32
    %c0_i32_1 = arith.constant 0 : i32
    return %c0_i32, %c0_i32_0 : i32, i32
  }
  func.func @transform_4(%arg0: i32) -> (i32, i32) {
    %c0_i32 = arith.constant 0 : i32
    %c0_i32_0 = arith.constant 0 : i32
    %c0_i32_1 = arith.constant 0 : i32
    return %c0_i32, %c0_i32_0 : i32, i32
  }
}

module attributes {stable_mosaic.version = 11 : i64} {
  func.func @kernel(%arg0: i32, %arg1: memref<256x128xf32, #tpu.memory_space<vmem>>, %arg2: memref<1x128xf32, #tpu.memory_space<vmem>>, %arg3: memref<1x128xf32, #tpu.memory_space<vmem>>, %arg4: memref<256x128xbf16, #tpu.memory_space<vmem>>) attributes {dimension_semantics = [#tpu.dimension_semantics<parallel>], iteration_bounds = array<i64: 2>, scalar_prefetch = 0 : i64, scratch_operands = 0 : i64, tpu.core_type = #tpu.core_type<tc>, window_params = [{transform_indices = @transform_0, window_bounds = array<i64: 256, 128>}, {pipeline_mode = #tpu.pipeline_mode<synchronous>, transform_indices = @transform_1, window_bounds = array<i64: 1, 128>}, {pipeline_mode = #tpu.pipeline_mode<synchronous>, transform_indices = @transform_2, window_bounds = array<i64: 1, 128>}, {transform_indices = @transform_3, window_bounds = array<i64: 256, 128>}]} {
    %c0 = arith.constant 0 : index
    %c0_0 = arith.constant 0 : index
    %0 = vector.load %arg1[%c0, %c0_0] : memref<256x128xf32, #tpu.memory_space<vmem>>, vector<256x128xf32>
    %c0_1 = arith.constant 0 : index
    %c0_2 = arith.constant 0 : index
    %1 = vector.load %arg2[%c0_1, %c0_2] : memref<1x128xf32, #tpu.memory_space<vmem>>, vector<1x128xf32>
    %2 = vector.broadcast %1 : vector<1x128xf32> to vector<256x128xf32>
    %3 = arith.mulf %0, %2 : vector<256x128xf32>
    %c0_3 = arith.constant 0 : index
    %c0_4 = arith.constant 0 : index
    %4 = vector.load %arg3[%c0_3, %c0_4] : memref<1x128xf32, #tpu.memory_space<vmem>>, vector<1x128xf32>
    %5 = vector.broadcast %4 : vector<1x128xf32> to vector<256x128xf32>
    %6 = arith.addf %3, %5 : vector<256x128xf32>
    %cst = arith.constant 0.000000e+00 : f32
    %7 = vector.broadcast %cst : f32 to vector<256x128xf32>
    %8 = arith.maximumf %6, %7 : vector<256x128xf32>
    %9 = arith.truncf %8 : vector<256x128xf32> to vector<256x128xbf16>
    %c0_5 = arith.constant 0 : index
    %c0_6 = arith.constant 0 : index
    %10 = vector.load %arg4[%c0_5, %c0_6] : memref<256x128xbf16, #tpu.memory_space<vmem>>, vector<256x128xbf16>
    tpu.vector_store %arg4[%c0_5, %c0_6], %9 {strides = array<i32>} : memref<256x128xbf16, #tpu.memory_space<vmem>>, vector<256x128xbf16>,
    return
  }
  func.func @transform_0(%arg0: i32) -> (i32, i32) {
    %c0_i32 = arith.constant 0 : i32
    %c0_i32_0 = arith.constant 0 : i32
    return %arg0, %c0_i32 : i32, i32
  }
  func.func @transform_1(%arg0: i32) -> (i32, i32) {
    %c0_i32 = arith.constant 0 : i32
    %c0_i32_0 = arith.constant 0 : i32
    %c0_i32_1 = arith.constant 0 : i32
    return %c0_i32, %c0_i32_0 : i32, i32
  }
  func.func @transform_2(%arg0: i32) -> (i32, i32) {
    %c0_i32 = arith.constant 0 : i32
    %c0_i32_0 = arith.constant 0 : i32
    %c0_i32_1 = arith.constant 0 : i32
    return %c0_i32, %c0_i32_0 : i32, i32
  }
  func.func @transform_3(%arg0: i32) -> (i32, i32) {
    %c0_i32 = arith.constant 0 : i32
    %c0_i32_0 = arith.constant 0 : i32
    return %arg0, %c0_i32 : i32, i32
  }
}

module attributes {stable_mosaic.version = 11 : i64} {
  func.func @kernel(%arg0: i32, %arg1: memref<256x128xf32, #tpu.memory_space<vmem>>, %arg2: memref<1x128xf32, #tpu.memory_space<vmem>>, %arg3: memref<1x128xf32, #tpu.memory_space<vmem>>, %arg4: memref<256x128xf32, #tpu.memory_space<vmem>>, %arg5: memref<1x128xf32, #tpu.memory_space<vmem>>, %arg6: memref<1x128xf32, #tpu.memory_space<vmem>>, %arg7: memref<256x128xf32, #tpu.memory_space<vmem>>) attributes {dimension_semantics = [#tpu.dimension_semantics<parallel>], iteration_bounds = array<i64: 2>, scalar_prefetch = 0 : i64, scratch_operands = 0 : i64, tpu.core_type = #tpu.core_type<tc>, window_params = [{transform_indices = @transform_0, window_bounds = array<i64: 256, 128>}, {pipeline_mode = #tpu.pipeline_mode<synchronous>, transform_indices = @transform_1, window_bounds = array<i64: 1, 128>}, {pipeline_mode = #tpu.pipeline_mode<synchronous>, transform_indices = @transform_2, window_bounds = array<i64: 1, 128>}, {transform_indices = @transform_3, window_bounds = array<i64: 256, 128>}, {pipeline_mode = #tpu.pipeline_mode<synchronous>, transform_indices = @transform_4, window_bounds = array<i64: 1, 128>}, {pipeline_mode = #tpu.pipeline_mode<synchronous>, transform_indices = @transform_5, window_bounds = array<i64: 1, 128>}, {transform_indices = @transform_6, window_bounds = array<i64: 256, 128>}]} {
    %c0 = arith.constant 0 : index
    %c0_0 = arith.constant 0 : index
    %0 = vector.load %arg1[%c0, %c0_0] : memref<256x128xf32, #tpu.memory_space<vmem>>, vector<256x128xf32>
    %c0_1 = arith.constant 0 : index
    %c0_2 = arith.constant 0 : index
    %1 = vector.load %arg2[%c0_1, %c0_2] : memref<1x128xf32, #tpu.memory_space<vmem>>, vector<1x128xf32>
    %2 = vector.broadcast %1 : vector<1x128xf32> to vector<256x128xf32>
    %3 = arith.mulf %0, %2 : vector<256x128xf32>
    %c0_3 = arith.constant 0 : index
    %c0_4 = arith.constant 0 : index
    %4 = vector.load %arg3[%c0_3, %c0_4] : memref<1x128xf32, #tpu.memory_space<vmem>>, vector<1x128xf32>
    %5 = vector.broadcast %4 : vector<1x128xf32> to vector<256x128xf32>
    %6 = arith.addf %3, %5 : vector<256x128xf32>
    %c0_5 = arith.constant 0 : index
    %c0_6 = arith.constant 0 : index
    %7 = vector.load %arg4[%c0_5, %c0_6] : memref<256x128xf32, #tpu.memory_space<vmem>>, vector<256x128xf32>
    %c0_7 = arith.constant 0 : index
    %c0_8 = arith.constant 0 : index
    %8 = vector.load %arg5[%c0_7, %c0_8] : memref<1x128xf32, #tpu.memory_space<vmem>>, vector<1x128xf32>
    %9 = vector.broadcast %8 : vector<1x128xf32> to vector<256x128xf32>
    %10 = arith.mulf %7, %9 : vector<256x128xf32>
    %c0_9 = arith.constant 0 : index
    %c0_10 = arith.constant 0 : index
    %11 = vector.load %arg6[%c0_9, %c0_10] : memref<1x128xf32, #tpu.memory_space<vmem>>, vector<1x128xf32>
    %12 = vector.broadcast %11 : vector<1x128xf32> to vector<256x128xf32>
    %13 = arith.addf %10, %12 : vector<256x128xf32>
    %14 = arith.addf %6, %13 : vector<256x128xf32>
    %cst = arith.constant 0.000000e+00 : f32
    %15 = vector.broadcast %cst : f32 to vector<256x128xf32>
    %16 = arith.maximumf %14, %15 : vector<256x128xf32>
    %c0_11 = arith.constant 0 : index
    %c0_12 = arith.constant 0 : index
    %17 = vector.load %arg7[%c0_11, %c0_12] : memref<256x128xf32, #tpu.memory_space<vmem>>, vector<256x128xf32>
    tpu.vector_store %arg7[%c0_11, %c0_12], %16 {strides = array<i32>} : memref<256x128xf32, #tpu.memory_space<vmem>>, vector<256x128xf32>,
    return
  }
  func.func @transform_0(%arg0: i32) -> (i32, i32) {
    %c0_i32 = arith.constant 0 : i32
    %c0_i32_0 = arith.constant 0 : i32
    return %arg0, %c0_i32 : i32, i32
  }
  func.func @transform_1(%arg0: i32) -> (i32, i32) {
    %c0_i32 = arith.constant 0 : i32
    %c0_i32_0 = arith.constant 0 : i32
    %c0_i32_1 = arith.constant 0 : i32
    return %c0_i32, %c0_i32_0 : i32, i32
  }
  func.func @transform_2(%arg0: i32) -> (i32, i32) {
    %c0_i32 = arith.constant 0 : i32
    %c0_i32_0 = arith.constant 0 : i32
    %c0_i32_1 = arith.constant 0 : i32
    return %c0_i32, %c0_i32_0 : i32, i32
  }
  func.func @transform_3(%arg0: i32) -> (i32, i32) {
    %c0_i32 = arith.constant 0 : i32
    %c0_i32_0 = arith.constant 0 : i32
    return %arg0, %c0_i32 : i32, i32
  }
  func.func @transform_4(%arg0: i32) -> (i32, i32) {
    %c0_i32 = arith.constant 0 : i32
    %c0_i32_0 = arith.constant 0 : i32
    %c0_i32_1 = arith.constant 0 : i32
    return %c0_i32, %c0_i32_0 : i32, i32
  }
  func.func @transform_5(%arg0: i32) -> (i32, i32) {
    %c0_i32 = arith.constant 0 : i32
    %c0_i32_0 = arith.constant 0 : i32
    %c0_i32_1 = arith.constant 0 : i32
    return %c0_i32, %c0_i32_0 : i32, i32
  }
  func.func @transform_6(%arg0: i32) -> (i32, i32) {
    %c0_i32 = arith.constant 0 : i32
    %c0_i32_0 = arith.constant 0 : i32
    return %arg0, %c0_i32 : i32, i32
  }
}

</mosaic_0001>

<llo_original>
// kernel: basic_block_pallas.5
$region0: #{basic_block_pallas.5}
  #allocation0 [shape = 'u32[]', space=smem, size = 0x4, offset = 0x4, fixed_abs, tag = 'smem constant byte address 0x4 - core index']
  #allocation1 [shape = 'u32[144,128]{1,0:T(1,128)}', space=vmem, size = 0x12000, scoped, tag = 'internal scratch']
  %s0 = inlined_call_operand.vmem [shape: f32[512,128], index: 0, kind: input, shape index: {}]
  %s1 = inlined_call_operand.vmem [shape: f32[1,128], index: 1, kind: input, shape index: {}]
  %s2 = inlined_call_operand.vmem [shape: f32[1,128], index: 2, kind: input, shape index: {}]
  %s3 = inlined_call_operand.vmem [shape: bf16[512,128], index: 3, kind: output, shape index: {}]
  %s4 = sld [smem:[#allocation0]]
  $region45: #{basic_block_pallas.5} parent=0
    _
  %s6 = ssub.s32 1, %s4
  %s7 = scalar_select 0, %s6, %s4
  loop: start=0, step=1, limit=4
  $region2: #{basic_block_pallas.5} parent=0 // loop_pre_header
    _
  $region3: #{basic_block_pallas.5} parent=0 // loop_header
    %s9 = sphi 0, %s13
    %p10 = scmp.ge.s32.totalorder %s9, 4
    %s19 = sphi 0, %s21
    %s22 = sphi 0, %s19
    %s23 = sphi 0, %s22
    %s39 = sphi 0, %s23
    %s43 = sphi 0, %s43
    %s45 = sphi 0, %s43
    %s46 = sphi 0, %s45
    %s60 = sphi 0, %s46
    %s64 = sphi 0, %s64
    %s66 = sphi 0, %s64
    %s67 = sphi 0, %s66
    %s81 = sphi 0, %s67
    %s87 = sphi 0, %s89
    %s90 = sphi 0, %s87
    %s91 = sphi 0, %s90
    %s107 = sphi 0, %s91
  $region4: #{basic_block_pallas.5} parent=0 // loop_header_branch
    %12 = sbr.rel (%p10) target = $region8
  $region5: #{basic_block_pallas.5} parent=0 // loop_body
    %s14 = ssub.s32 %s9, 1
    %s15 = ssub.s32 %s9, 2
    %s16 = sadd.s32 %s9, 1
    %s17 = ssub.s32 %s9, %s16
    %p18 = scmp.eq.s32.totalorder %s17, 0
    %s20 = sadd.s32 %s19, 1
    %s21 = scalar_select %p18, %s19, %s20
    %p24 = pneg %p18
    %p25 = scmp.eq.s32.totalorder %s9, 1
    %p26 = por %p24, %p25
    %p27 = scmp.ne.s32.totalorder %s19, %s22
    %p28 = scmp.eq.s32.totalorder %s9, 0
    %p29 = por %p27, %p28
    %p30 = scmp.ne.s32.totalorder %s19, %s22
    %p31 = scmp.eq.s32.totalorder %s14, 1
    %p32 = por %p30, %p31
    %p33 = scmp.ne.s32.totalorder %s22, %s23
    %p34 = scmp.eq.s32.totalorder %s14, 0
    %p35 = por %p33, %p34
    %p36 = scmp.ne.s32.totalorder %s22, %s23
    %p37 = scmp.eq.s32.totalorder %s15, 1
    %p38 = por %p36, %p37
    %p40 = scmp.ne.s32.totalorder %s23, %s39
    %p41 = scmp.eq.s32.totalorder %s15, 0
    %p42 = por %p40, %p41
    %s44 = sadd.s32 %s43, 1
    %p47 = scmp.eq.s32.totalorder %s9, 1
    %p48 = scmp.ne.s32.totalorder %s43, %s45
    %p49 = scmp.eq.s32.totalorder %s9, 0
    %p50 = por %p48, %p49
    %p51 = scmp.ne.s32.totalorder %s43, %s45
    %p52 = scmp.eq.s32.totalorder %s14, 1
    %p53 = por %p51, %p52
    %p54 = scmp.ne.s32.totalorder %s45, %s46
    %p55 = scmp.eq.s32.totalorder %s14, 0
    %p56 = por %p54, %p55
    %p57 = scmp.ne.s32.totalorder %s45, %s46
    %p58 = scmp.eq.s32.totalorder %s15, 1
    %p59 = por %p57, %p58
    %p61 = scmp.ne.s32.totalorder %s46, %s60
    %p62 = scmp.eq.s32.totalorder %s15, 0
    %p63 = por %p61, %p62
    %s65 = sadd.s32 %s64, 1
    %p68 = scmp.eq.s32.totalorder %s9, 1
    %p69 = scmp.ne.s32.totalorder %s64, %s66
    %p70 = scmp.eq.s32.totalorder %s9, 0
    %p71 = por %p69, %p70
    %p72 = scmp.ne.s32.totalorder %s64, %s66
    %p73 = scmp.eq.s32.totalorder %s14, 1
    %p74 = por %p72, %p73
    %p75 = scmp.ne.s32.totalorder %s66, %s67
    %p76 = scmp.eq.s32.totalorder %s14, 0
    %p77 = por %p75, %p76
    %p78 = scmp.ne.s32.totalorder %s66, %s67
    %p79 = scmp.eq.s32.totalorder %s15, 1
    %p80 = por %p78, %p79
    %p82 = scmp.ne.s32.totalorder %s67, %s81
    %p83 = scmp.eq.s32.totalorder %s15, 0
    %p84 = por %p82, %p83
    %s85 = ssub.s32 %s9, %s16
    %p86 = scmp.eq.s32.totalorder %s85, 0
    %s88 = sadd.s32 %s87, 1
    %s89 = scalar_select %p86, %s87, %s88
    %p92 = pneg %p86
    %p93 = scmp.eq.s32.totalorder %s9, 1
    %p94 = por %p92, %p93
    %p95 = scmp.ne.s32.totalorder %s87, %s90
    %p96 = scmp.eq.s32.totalorder %s9, 0
    %p97 = por %p95, %p96
    %p98 = scmp.ne.s32.totalorder %s87, %s90
    %p99 = scmp.eq.s32.totalorder %s14, 1
    %p100 = por %p98, %p99
    %p101 = scmp.ne.s32.totalorder %s90, %s91
    %p102 = scmp.eq.s32.totalorder %s14, 0
    %p103 = por %p101, %p102
    %p104 = scmp.ne.s32.totalorder %s90, %s91
    %p105 = scmp.eq.s32.totalorder %s15, 1
    %p106 = por %p104, %p105
    %p108 = scmp.ne.s32.totalorder %s91, %s107
    %p109 = scmp.eq.s32.totalorder %s15, 0
    %p110 = por %p108, %p109
    %p111 = scmp.le.s32.totalorder 1, %s9
    %p112 = scmp.lt.s32.totalorder %s9, 3
    %p113 = pnand %p111, %p112
    %p114 = pneg %p113
    // Predicated region
    $region9: #{basic_block_pallas.5} parent=5 // pred_check
      _
    $region10: #{basic_block_pallas.5} parent=5 // pred_check_branch
      %116 = sbr.rel (%p113) target = $region12
    $region11: #{basic_block_pallas.5} parent=5 // pred_region
      %s117 = ssub.s32 %s9, 1
      // Predicated region
      $region13: #{basic_block_pallas.5} parent=11 // pred_check
        %p118 = pneg %p56
      $region14: #{basic_block_pallas.5} parent=11 // pred_check_branch
        %120 = sbr.rel (%p118) target = $region16
      $region15: #{basic_block_pallas.5} parent=11 // pred_region
        _
      $region16: #{basic_block_pallas.5} parent=11 // pred_fallthru
        _
      // Predicated region
      $region17: #{basic_block_pallas.5} parent=11 // pred_check
        %p121 = pneg %p77
      $region18: #{basic_block_pallas.5} parent=11 // pred_check_branch
        %123 = sbr.rel (%p121) target = $region20
      $region19: #{basic_block_pallas.5} parent=11 // pred_region
        _
      $region20: #{basic_block_pallas.5} parent=11 // pred_fallthru
        _
    $region12: #{basic_block_pallas.5} parent=5 // pred_fallthru
      _
    %p124 = scmp.lt.s32.totalorder %s9, 2
    // Predicated region
    $region21: #{basic_block_pallas.5} parent=5 // pred_check
      %p125 = pneg %p124
    $region22: #{basic_block_pallas.5} parent=5 // pred_check_branch
      %127 = sbr.rel (%p125) target = $region24
    $region23: #{basic_block_pallas.5} parent=5 // pred_region
      // Predicated region
      $region25: #{basic_block_pallas.5} parent=23 // pred_check
        %p128 = pneg %p29
      $region26: #{basic_block_pallas.5} parent=23 // pred_check_branch
        %130 = sbr.rel (%p128) target = $region28
      $region27: #{basic_block_pallas.5} parent=23 // pred_region
        %s131 = smul.u32 32, %s9
        %p132 = scmp.lt.s32.totalorder %s131, 63
        %s133 = scalar_select %p132, %s131, 63
        %s134 = smul.addr %s133, 8
        %s135 = scalar_lea.vmem %s0, %s134
        %s136 = smul.u32 32, %s9
      $region28: #{basic_block_pallas.5} parent=23 // pred_fallthru
        _
    $region24: #{basic_block_pallas.5} parent=5 // pred_fallthru
      _
    %p137 = scmp.le.s32.totalorder 1, %s9
    %p138 = scmp.lt.s32.totalorder %s9, 3
    %p139 = pnand %p137, %p138
    %p140 = pneg %p139
    // Predicated region
    $region29: #{basic_block_pallas.5} parent=5 // pred_check
      _
    $region30: #{basic_block_pallas.5} parent=5 // pred_check_branch
      %142 = sbr.rel (%p139) target = $region32
    $region31: #{basic_block_pallas.5} parent=5 // pred_region
      %s143 = ssub.s32 %s9, 1
      %s144 = smul.u32 32, %s14
      %p145 = scmp.lt.s32.totalorder %s144, 63
      %s146 = scalar_select %p145, %s144, 63
      %s147 = smul.addr %s146, 8
      %s148 = scalar_lea.vmem %s0, %s147
      %p149 = pneg %p35
      %p150 = pneg %p32
      %p151 = pneg %p56
      %p152 = pneg %p53
      %p153 = pneg %p77
      %p154 = pneg %p74
      %p155 = pneg %p103
      %p156 = pneg %p100
      %s157 = smul.u32 32, %s14
      %p158 = scmp.lt.s32.totalorder %s157, 63
      %s159 = scalar_select %p158, %s157, 63
      %s160 = smul.addr %s159, 4
      %s161 = scalar_lea.vmem %s3, %s160
      %s162 = smul.u32 32, %s14
      %p163 = scmp.lt.s32.totalorder %s162, 63
      %s164 = scalar_select %p163, %s162, 63
      %s165 = smul.addr %s164, 8
      %s166 = scalar_lea.vmem %s0, %s165
      %s167 = smul.u32 32, %s14
      %s168 = smul.u32 32, %s14
      %p169 = scmp.lt.s32.totalorder %s168, 63
      %s170 = scalar_select %p169, %s168, 63
      %s171 = smul.addr %s170, 4
      %s172 = scalar_lea.vmem %s3, %s171
      %s173 = smul.u32 32, %s14
      %v174 = vld [vmem:[%s166] sm:$0xff]
      %v175 = vld [vmem:[%s166 + $0x8] sm:$0xff]
      %v176 = vld [vmem:[%s166 + $0x10] sm:$0xff]
      %v177 = vld [vmem:[%s166 + $0x18] sm:$0xff]
      %v178 = vld [vmem:[%s166 + $0x20] sm:$0xff]
      %v179 = vld [vmem:[%s166 + $0x28] sm:$0xff]
      %v180 = vld [vmem:[%s166 + $0x30] sm:$0xff]
      %v181 = vld [vmem:[%s166 + $0x38] sm:$0xff]
      %v182 = vld [vmem:[%s166 + $0x40] sm:$0xff]
      %v183 = vld [vmem:[%s166 + $0x48] sm:$0xff]
      %v184 = vld [vmem:[%s166 + $0x50] sm:$0xff]
      %v185 = vld [vmem:[%s166 + $0x58] sm:$0xff]
      %v186 = vld [vmem:[%s166 + $0x60] sm:$0xff]
      %v187 = vld [vmem:[%s166 + $0x68] sm:$0xff]
      %v188 = vld [vmem:[%s166 + $0x70] sm:$0xff]
      %v189 = vld [vmem:[%s166 + $0x78] sm:$0xff]
      %v190 = vld [vmem:[%s166 + $0x80] sm:$0xff]
      %v191 = vld [vmem:[%s166 + $0x88] sm:$0xff]
      %v192 = vld [vmem:[%s166 + $0x90] sm:$0xff]
      %v193 = vld [vmem:[%s166 + $0x98] sm:$0xff]
      %v194 = vld [vmem:[%s166 + $0xa0] sm:$0xff]
      %v195 = vld [vmem:[%s166 + $0xa8] sm:$0xff]
      %v196 = vld [vmem:[%s166 + $0xb0] sm:$0xff]
      %v197 = vld [vmem:[%s166 + $0xb8] sm:$0xff]
      %v198 = vld [vmem:[%s166 + $0xc0] sm:$0xff]
      %v199 = vld [vmem:[%s166 + $0xc8] sm:$0xff]
      %v200 = vld [vmem:[%s166 + $0xd0] sm:$0xff]
      %v201 = vld [vmem:[%s166 + $0xd8] sm:$0xff]
      %v202 = vld [vmem:[%s166 + $0xe0] sm:$0xff]
      %v203 = vld [vmem:[%s166 + $0xe8] sm:$0xff]
      %v204 = vld [vmem:[%s166 + $0xf0] sm:$0xff]
      %v205 = vld [vmem:[%s166 + $0xf8] sm:$0xff]
      %v206 = vld [vmem:[%s1] sm:$0x1]
      %v208 = vlaneseq
      %v209 = vshrl.u32 %v208, 7
      %v210 = vsub.s32 0, %v209
      %v211 = vrot.slane %v206, %v210
      %v213 = vmul.f32 %v174, %v211
      %v214 = vmul.f32 %v175, %v211
      %v215 = vmul.f32 %v176, %v211
      %v216 = vmul.f32 %v177, %v211
      %v217 = vmul.f32 %v178, %v211
      %v218 = vmul.f32 %v179, %v211
      %v219 = vmul.f32 %v180, %v211
      %v220 = vmul.f32 %v181, %v211
      %v221 = vmul.f32 %v182, %v211
      %v222 = vmul.f32 %v183, %v211
      %v223 = vmul.f32 %v184, %v211
      %v224 = vmul.f32 %v185, %v211
      %v225 = vmul.f32 %v186, %v211
      %v226 = vmul.f32 %v187, %v211
      %v227 = vmul.f32 %v188, %v211
      %v228 = vmul.f32 %v189, %v211
      %v229 = vmul.f32 %v190, %v211
      %v230 = vmul.f32 %v191, %v211
      %v231 = vmul.f32 %v192, %v211
      %v232 = vmul.f32 %v193, %v211
      %v233 = vmul.f32 %v194, %v211
      %v234 = vmul.f32 %v195, %v211
      %v235 = vmul.f32 %v196, %v211
      %v236 = vmul.f32 %v197, %v211
      %v237 = vmul.f32 %v198, %v211
      %v238 = vmul.f32 %v199, %v211
      %v239 = vmul.f32 %v200, %v211
      %v240 = vmul.f32 %v201, %v211
      %v241 = vmul.f32 %v202, %v211
      %v242 = vmul.f32 %v203, %v211
      %v243 = vmul.f32 %v204, %v211
      %v244 = vmul.f32 %v205, %v211
      %v245 = vld [vmem:[%s2] sm:$0x1]
      %v247 = vlaneseq
      %v248 = vshrl.u32 %v247, 7
      %v249 = vsub.s32 0, %v248
      %v250 = vrot.slane %v245, %v249
      %v252 = vadd.f32 %v213, %v250
      %v253 = vadd.f32 %v214, %v250
      %v254 = vadd.f32 %v215, %v250
      %v255 = vadd.f32 %v216, %v250
      %v256 = vadd.f32 %v217, %v250
      %v257 = vadd.f32 %v218, %v250
      %v258 = vadd.f32 %v219, %v250
      %v259 = vadd.f32 %v220, %v250
      %v260 = vadd.f32 %v221, %v250
      %v261 = vadd.f32 %v222, %v250
      %v262 = vadd.f32 %v223, %v250
      %v263 = vadd.f32 %v224, %v250
      %v264 = vadd.f32 %v225, %v250
      %v265 = vadd.f32 %v226, %v250
      %v266 = vadd.f32 %v227, %v250
      %v267 = vadd.f32 %v228, %v250
      %v268 = vadd.f32 %v229, %v250
      %v269 = vadd.f32 %v230, %v250
      %v270 = vadd.f32 %v231, %v250
      %v271 = vadd.f32 %v232, %v250
      %v272 = vadd.f32 %v233, %v250
      %v273 = vadd.f32 %v234, %v250
      %v274 = vadd.f32 %v235, %v250
      %v275 = vadd.f32 %v236, %v250
      %v276 = vadd.f32 %v237, %v250
      %v277 = vadd.f32 %v238, %v250
      %v278 = vadd.f32 %v239, %v250
      %v279 = vadd.f32 %v240, %v250
      %v280 = vadd.f32 %v241, %v250
      %v281 = vadd.f32 %v242, %v250
      %v282 = vadd.f32 %v243, %v250
      %v283 = vadd.f32 %v244, %v250
      %v284 = vmax.f32 %v252, 0.0
      %v285 = vmax.f32 %v253, 0.0
      %v286 = vmax.f32 %v254, 0.0
      %v287 = vmax.f32 %v255, 0.0
      %v288 = vmax.f32 %v256, 0.0
      %v289 = vmax.f32 %v257, 0.0
      %v290 = vmax.f32 %v258, 0.0
      %v291 = vmax.f32 %v259, 0.0
      %v292 = vmax.f32 %v260, 0.0
      %v293 = vmax.f32 %v261, 0.0
      %v294 = vmax.f32 %v262, 0.0
      %v295 = vmax.f32 %v263, 0.0
      %v296 = vmax.f32 %v264, 0.0
      %v297 = vmax.f32 %v265, 0.0
      %v298 = vmax.f32 %v266, 0.0
      %v299 = vmax.f32 %v267, 0.0
      %v300 = vmax.f32 %v268, 0.0
      %v301 = vmax.f32 %v269, 0.0
      %v302 = vmax.f32 %v270, 0.0
      %v303 = vmax.f32 %v271, 0.0
      %v304 = vmax.f32 %v272, 0.0
      %v305 = vmax.f32 %v273, 0.0
      %v306 = vmax.f32 %v274, 0.0
      %v307 = vmax.f32 %v275, 0.0
      %v308 = vmax.f32 %v276, 0.0
      %v309 = vmax.f32 %v277, 0.0
      %v310 = vmax.f32 %v278, 0.0
      %v311 = vmax.f32 %v279, 0.0
      %v312 = vmax.f32 %v280, 0.0
      %v313 = vmax.f32 %v281, 0.0
      %v314 = vmax.f32 %v282, 0.0
      %v315 = vmax.f32 %v283, 0.0
      %v316 = vpack.c.bf16 %v285, %v284
      %v317 = vpack.c.bf16 %v287, %v286
      %v318 = vpack.c.bf16 %v289, %v288
      %v319 = vpack.c.bf16 %v291, %v290
      %v320 = vpack.c.bf16 %v293, %v292
      %v321 = vpack.c.bf16 %v295, %v294
      %v322 = vpack.c.bf16 %v297, %v296
      %v323 = vpack.c.bf16 %v299, %v298
      %v324 = vpack.c.bf16 %v301, %v300
      %v325 = vpack.c.bf16 %v303, %v302
      %v326 = vpack.c.bf16 %v305, %v304
      %v327 = vpack.c.bf16 %v307, %v306
      %v328 = vpack.c.bf16 %v309, %v308
      %v329 = vpack.c.bf16 %v311, %v310
      %v330 = vpack.c.bf16 %v313, %v312
      %v331 = vpack.c.bf16 %v315, %v314
      %v348 = vunpack.c.l.b16 %v316
      %v349 = vunpack.c.h.b16 %v316
      %v350 = vunpack.c.l.b16 %v317
      %v351 = vunpack.c.h.b16 %v317
      %v352 = vunpack.c.l.b16 %v318
      %v353 = vunpack.c.h.b16 %v318
      %v354 = vunpack.c.l.b16 %v319
      %v355 = vunpack.c.h.b16 %v319
      %v356 = vunpack.c.l.b16 %v320
      %v357 = vunpack.c.h.b16 %v320
      %v358 = vunpack.c.l.b16 %v321
      %v359 = vunpack.c.h.b16 %v321
      %v360 = vunpack.c.l.b16 %v322
      %v361 = vunpack.c.h.b16 %v322
      %v362 = vunpack.c.l.b16 %v323
      %v363 = vunpack.c.h.b16 %v323
      %v364 = vunpack.c.l.b16 %v324
      %v365 = vunpack.c.h.b16 %v324
      %v366 = vunpack.c.l.b16 %v325
      %v367 = vunpack.c.h.b16 %v325
      %v368 = vunpack.c.l.b16 %v326
      %v369 = vunpack.c.h.b16 %v326
      %v370 = vunpack.c.l.b16 %v327
      %v371 = vunpack.c.h.b16 %v327
      %v372 = vunpack.c.l.b16 %v328
      %v373 = vunpack.c.h.b16 %v328
      %v374 = vunpack.c.l.b16 %v329
      %v375 = vunpack.c.h.b16 %v329
      %v376 = vunpack.c.l.b16 %v330
      %v377 = vunpack.c.h.b16 %v330
      %v378 = vunpack.c.l.b16 %v331
      %v379 = vunpack.c.h.b16 %v331
      %v380 = vpack.c.b16 %v348, %v348
      %v381 = vpack.c.b16 %v349, %v349
      %v382 = vpack.c.b16 %v350, %v350
      %v383 = vpack.c.b16 %v351, %v351
      %v384 = vpack.c.b16 %v352, %v352
      %v385 = vpack.c.b16 %v353, %v353
      %v386 = vpack.c.b16 %v354, %v354
      %v387 = vpack.c.b16 %v355, %v355
      %v388 = vpack.c.b16 %v356, %v356
      %v389 = vpack.c.b16 %v357, %v357
      %v390 = vpack.c.b16 %v358, %v358
      %v391 = vpack.c.b16 %v359, %v359
      %v392 = vpack.c.b16 %v360, %v360
      %v393 = vpack.c.b16 %v361, %v361
      %v394 = vpack.c.b16 %v362, %v362
      %v395 = vpack.c.b16 %v363, %v363
      %v396 = vpack.c.b16 %v364, %v364
      %v397 = vpack.c.b16 %v365, %v365
      %v398 = vpack.c.b16 %v366, %v366
      %v399 = vpack.c.b16 %v367, %v367
      %v400 = vpack.c.b16 %v368, %v368
      %v401 = vpack.c.b16 %v369, %v369
      %v402 = vpack.c.b16 %v370, %v370
      %v403 = vpack.c.b16 %v371, %v371
      %v404 = vpack.c.b16 %v372, %v372
      %v405 = vpack.c.b16 %v373, %v373
      %v406 = vpack.c.b16 %v374, %v374
      %v407 = vpack.c.b16 %v375, %v375
      %v408 = vpack.c.b16 %v376, %v376
      %v409 = vpack.c.b16 %v377, %v377
      %v410 = vpack.c.b16 %v378, %v378
      %v411 = vpack.c.b16 %v379, %v379
      %444 = vst [vmem:[%s172] sm:$0xf] %v380
      %445 = vst [vmem:[%s172 + $0x4] sm:$0xf] %v381
      %446 = vst [vmem:[%s172 + $0x8] sm:$0xf] %v382
      %447 = vst [vmem:[%s172 + $0xc] sm:$0xf] %v383
      %448 = vst [vmem:[%s172 + $0x10] sm:$0xf] %v384
      %449 = vst [vmem:[%s172 + $0x14] sm:$0xf] %v385
      %450 = vst [vmem:[%s172 + $0x18] sm:$0xf] %v386
      %451 = vst [vmem:[%s172 + $0x1c] sm:$0xf] %v387
      %452 = vst [vmem:[%s172 + $0x20] sm:$0xf] %v388
      %453 = vst [vmem:[%s172 + $0x24] sm:$0xf] %v389
      %454 = vst [vmem:[%s172 + $0x28] sm:$0xf] %v390
      %455 = vst [vmem:[%s172 + $0x2c] sm:$0xf] %v391
      %456 = vst [vmem:[%s172 + $0x30] sm:$0xf] %v392
      %457 = vst [vmem:[%s172 + $0x34] sm:$0xf] %v393
      %458 = vst [vmem:[%s172 + $0x38] sm:$0xf] %v394
      %459 = vst [vmem:[%s172 + $0x3c] sm:$0xf] %v395
      %460 = vst [vmem:[%s172 + $0x40] sm:$0xf] %v396
      %461 = vst [vmem:[%s172 + $0x44] sm:$0xf] %v397
      %462 = vst [vmem:[%s172 + $0x48] sm:$0xf] %v398
      %463 = vst [vmem:[%s172 + $0x4c] sm:$0xf] %v399
      %464 = vst [vmem:[%s172 + $0x50] sm:$0xf] %v400
      %465 = vst [vmem:[%s172 + $0x54] sm:$0xf] %v401
      %466 = vst [vmem:[%s172 + $0x58] sm:$0xf] %v402
      %467 = vst [vmem:[%s172 + $0x5c] sm:$0xf] %v403
      %468 = vst [vmem:[%s172 + $0x60] sm:$0xf] %v404
      %469 = vst [vmem:[%s172 + $0x64] sm:$0xf] %v405
      %470 = vst [vmem:[%s172 + $0x68] sm:$0xf] %v406
      %471 = vst [vmem:[%s172 + $0x6c] sm:$0xf] %v407
      %472 = vst [vmem:[%s172 + $0x70] sm:$0xf] %v408
      %473 = vst [vmem:[%s172 + $0x74] sm:$0xf] %v409
      %474 = vst [vmem:[%s172 + $0x78] sm:$0xf] %v410
      %475 = vst [vmem:[%s172 + $0x7c] sm:$0xf] %v411
      %s476 = smul.u32 32, %s14
      %p477 = scmp.lt.s32.totalorder %s476, 63
      %s478 = scalar_select %p477, %s476, 63
      %s479 = smul.addr %s478, 4
      %s480 = scalar_lea.vmem %s3, %s479
      // Predicated region
      $region33: #{basic_block_pallas.5} parent=31 // pred_check
        %p481 = pneg %p100
      $region34: #{basic_block_pallas.5} parent=31 // pred_check_branch
        %483 = sbr.rel (%p481) target = $region36
      $region35: #{basic_block_pallas.5} parent=31 // pred_region
        %s484 = smul.u32 32, %s14
      $region36: #{basic_block_pallas.5} parent=31 // pred_fallthru
        _
    $region32: #{basic_block_pallas.5} parent=5 // pred_fallthru
      _
    %p485 = scmp.le.s32.totalorder 2, %s9
    // Predicated region
    $region37: #{basic_block_pallas.5} parent=5 // pred_check
      %p486 = pneg %p485
    $region38: #{basic_block_pallas.5} parent=5 // pred_check_branch
      %488 = sbr.rel (%p486) target = $region40
    $region39: #{basic_block_pallas.5} parent=5 // pred_region
      %s489 = ssub.s32 %s9, 2
      // Predicated region
      $region41: #{basic_block_pallas.5} parent=39 // pred_check
        %p490 = pneg %p106
      $region42: #{basic_block_pallas.5} parent=39 // pred_check_branch
        %492 = sbr.rel (%p490) target = $region44
      $region43: #{basic_block_pallas.5} parent=39 // pred_region
        %s493 = smul.u32 32, %s15
        %p494 = scmp.lt.s32.totalorder %s493, 63
        %s495 = scalar_select %p494, %s493, 63
        %s496 = smul.addr %s495, 4
        %s497 = scalar_lea.vmem %s3, %s496
      $region44: #{basic_block_pallas.5} parent=39 // pred_fallthru
        _
    $region40: #{basic_block_pallas.5} parent=5 // pred_fallthru
      _
  $region6: #{basic_block_pallas.5} parent=0 // loop_footer
    %s13 = sadd.s32 1, %s9
  $region7: #{basic_block_pallas.5} parent=0 // loop_footer_branch
    %8 = sbr.rel target = $region3
  $region8: #{basic_block_pallas.5} parent=0 // loop_exit
    _

// kernel: basic_block_pallas.4
$region0: #{basic_block_pallas.4}
  #allocation0 [shape = 'u32[]', space=smem, size = 0x4, offset = 0x4, fixed_abs, tag = 'smem constant byte address 0x4 - core index']
  #allocation1 [shape = 'u32[144,128]{1,0:T(1,128)}', space=vmem, size = 0x12000, scoped, tag = 'internal scratch']
  %s0 = inlined_call_operand.vmem [shape: bf16[512,128], index: 0, kind: input, shape index: {}]
  %s1 = inlined_call_operand.vmem [shape: bf16[128,128], index: 1, kind: input, shape index: {}]
  %s2 = inlined_call_operand.vmem [shape: f32[512,128], index: 2, kind: output, shape index: {0}]
  %s3 = inlined_call_operand.vmem [shape: f32[1,128], index: 3, kind: output, shape index: {1}]
  %s4 = inlined_call_operand.vmem [shape: f32[1,128], index: 4, kind: output, shape index: {2}]
  %5 = xla_tuple %s2, %s3, %s4
  %s6 = sld [smem:[#allocation0]]
  $region61: #{basic_block_pallas.4} parent=0
    _
  %s8 = ssub.s32 1, %s6
  %s9 = scalar_select 0, %s8, %s6
  loop: start=0, step=1, limit=4
  $region2: #{basic_block_pallas.4} parent=0 // loop_pre_header
    _
  $region3: #{basic_block_pallas.4} parent=0 // loop_header
    %s11 = sphi 0, %s15
    %p12 = scmp.ge.s32.totalorder %s11, 4
    %s21 = sphi 0, %s23
    %s24 = sphi 0, %s21
    %s25 = sphi 0, %s24
    %s41 = sphi 0, %s25
    %s45 = sphi 0, %s45
    %s47 = sphi 0, %s45
    %s48 = sphi 0, %s47
    %s62 = sphi 0, %s48
    %s68 = sphi 0, %s70
    %s71 = sphi 0, %s68
    %s72 = sphi 0, %s71
    %s88 = sphi 0, %s72
    %s92 = sphi 0, %s92
    %s94 = sphi 0, %s92
    %s95 = sphi 0, %s94
    %s109 = sphi 0, %s95
    %s113 = sphi 0, %s113
    %s115 = sphi 0, %s113
    %s116 = sphi 0, %s115
    %s130 = sphi 0, %s116
  $region4: #{basic_block_pallas.4} parent=0 // loop_header_branch
    %14 = sbr.rel (%p12) target = $region8
  $region5: #{basic_block_pallas.4} parent=0 // loop_body
    %s16 = ssub.s32 %s11, 1
    %s17 = ssub.s32 %s11, 2
    %s18 = sadd.s32 %s11, 1
    %s19 = ssub.s32 %s11, %s18
    %p20 = scmp.eq.s32.totalorder %s19, 0
    %s22 = sadd.s32 %s21, 1
    %s23 = scalar_select %p20, %s21, %s22
    %p26 = pneg %p20
    %p27 = scmp.eq.s32.totalorder %s11, 1
    %p28 = por %p26, %p27
    %p29 = scmp.ne.s32.totalorder %s21, %s24
    %p30 = scmp.eq.s32.totalorder %s11, 0
    %p31 = por %p29, %p30
    %p32 = scmp.ne.s32.totalorder %s21, %s24
    %p33 = scmp.eq.s32.totalorder %s16, 1
    %p34 = por %p32, %p33
    %p35 = scmp.ne.s32.totalorder %s24, %s25
    %p36 = scmp.eq.s32.totalorder %s16, 0
    %p37 = por %p35, %p36
    %p38 = scmp.ne.s32.totalorder %s24, %s25
    %p39 = scmp.eq.s32.totalorder %s17, 1
    %p40 = por %p38, %p39
    %p42 = scmp.ne.s32.totalorder %s25, %s41
    %p43 = scmp.eq.s32.totalorder %s17, 0
    %p44 = por %p42, %p43
    %s46 = sadd.s32 %s45, 1
    %p49 = scmp.eq.s32.totalorder %s11, 1
    %p50 = scmp.ne.s32.totalorder %s45, %s47
    %p51 = scmp.eq.s32.totalorder %s11, 0
    %p52 = por %p50, %p51
    %p53 = scmp.ne.s32.totalorder %s45, %s47
    %p54 = scmp.eq.s32.totalorder %s16, 1
    %p55 = por %p53, %p54
    %p56 = scmp.ne.s32.totalorder %s47, %s48
    %p57 = scmp.eq.s32.totalorder %s16, 0
    %p58 = por %p56, %p57
    %p59 = scmp.ne.s32.totalorder %s47, %s48
    %p60 = scmp.eq.s32.totalorder %s17, 1
    %p61 = por %p59, %p60
    %p63 = scmp.ne.s32.totalorder %s48, %s62
    %p64 = scmp.eq.s32.totalorder %s17, 0
    %p65 = por %p63, %p64
    %s66 = ssub.s32 %s11, %s18
    %p67 = scmp.eq.s32.totalorder %s66, 0
    %s69 = sadd.s32 %s68, 1
    %s70 = scalar_select %p67, %s68, %s69
    %p73 = pneg %p67
    %p74 = scmp.eq.s32.totalorder %s11, 1
    %p75 = por %p73, %p74
    %p76 = scmp.ne.s32.totalorder %s68, %s71
    %p77 = scmp.eq.s32.totalorder %s11, 0
    %p78 = por %p76, %p77
    %p79 = scmp.ne.s32.totalorder %s68, %s71
    %p80 = scmp.eq.s32.totalorder %s16, 1
    %p81 = por %p79, %p80
    %p82 = scmp.ne.s32.totalorder %s71, %s72
    %p83 = scmp.eq.s32.totalorder %s16, 0
    %p84 = por %p82, %p83
    %p85 = scmp.ne.s32.totalorder %s71, %s72
    %p86 = scmp.eq.s32.totalorder %s17, 1
    %p87 = por %p85, %p86
    %p89 = scmp.ne.s32.totalorder %s72, %s88
    %p90 = scmp.eq.s32.totalorder %s17, 0
    %p91 = por %p89, %p90
    %s93 = sadd.s32 %s92, 1
    %p96 = scmp.eq.s32.totalorder %s11, 1
    %p97 = scmp.ne.s32.totalorder %s92, %s94
    %p98 = scmp.eq.s32.totalorder %s11, 0
    %p99 = por %p97, %p98
    %p100 = scmp.ne.s32.totalorder %s92, %s94
    %p101 = scmp.eq.s32.totalorder %s16, 1
    %p102 = por %p100, %p101
    %p103 = scmp.ne.s32.totalorder %s94, %s95
    %p104 = scmp.eq.s32.totalorder %s16, 0
    %p105 = por %p103, %p104
    %p106 = scmp.ne.s32.totalorder %s94, %s95
    %p107 = scmp.eq.s32.totalorder %s17, 1
    %p108 = por %p106, %p107
    %p110 = scmp.ne.s32.totalorder %s95, %s109
    %p111 = scmp.eq.s32.totalorder %s17, 0
    %p112 = por %p110, %p111
    %s114 = sadd.s32 %s113, 1
    %p117 = scmp.eq.s32.totalorder %s11, 1
    %p118 = scmp.ne.s32.totalorder %s113, %s115
    %p119 = scmp.eq.s32.totalorder %s11, 0
    %p120 = por %p118, %p119
    %p121 = scmp.ne.s32.totalorder %s113, %s115
    %p122 = scmp.eq.s32.totalorder %s16, 1
    %p123 = por %p121, %p122
    %p124 = scmp.ne.s32.totalorder %s115, %s116
    %p125 = scmp.eq.s32.totalorder %s16, 0
    %p126 = por %p124, %p125
    %p127 = scmp.ne.s32.totalorder %s115, %s116
    %p128 = scmp.eq.s32.totalorder %s17, 1
    %p129 = por %p127, %p128
    %p131 = scmp.ne.s32.totalorder %s116, %s130
    %p132 = scmp.eq.s32.totalorder %s17, 0
    %p133 = por %p131, %p132
    %p134 = scmp.le.s32.totalorder 1, %s11
    %p135 = scmp.lt.s32.totalorder %s11, 3
    %p136 = pnand %p134, %p135
    %p137 = pneg %p136
    // Predicated region
    $region9: #{basic_block_pallas.4} parent=5 // pred_check
      _
    $region10: #{basic_block_pallas.4} parent=5 // pred_check_branch
      %139 = sbr.rel (%p136) target = $region12
    $region11: #{basic_block_pallas.4} parent=5 // pred_region
      %s140 = ssub.s32 %s11, 1
      // Predicated region
      $region13: #{basic_block_pallas.4} parent=11 // pred_check
        %p141 = pneg %p58
      $region14: #{basic_block_pallas.4} parent=11 // pred_check_branch
        %143 = sbr.rel (%p141) target = $region16
      $region15: #{basic_block_pallas.4} parent=11 // pred_region
        _
      $region16: #{basic_block_pallas.4} parent=11 // pred_fallthru
        _
    $region12: #{basic_block_pallas.4} parent=5 // pred_fallthru
      _
    %p144 = scmp.lt.s32.totalorder %s11, 2
    // Predicated region
    $region17: #{basic_block_pallas.4} parent=5 // pred_check
      %p145 = pneg %p144
    $region18: #{basic_block_pallas.4} parent=5 // pred_check_branch
      %147 = sbr.rel (%p145) target = $region20
    $region19: #{basic_block_pallas.4} parent=5 // pred_region
      // Predicated region
      $region21: #{basic_block_pallas.4} parent=19 // pred_check
        %p148 = pneg %p31
      $region22: #{basic_block_pallas.4} parent=19 // pred_check_branch
        %150 = sbr.rel (%p148) target = $region24
      $region23: #{basic_block_pallas.4} parent=19 // pred_region
        %s151 = smul.u32 32, %s11
        %p152 = scmp.lt.s32.totalorder %s151, 63
        %s153 = scalar_select %p152, %s151, 63
        %s154 = smul.addr %s153, 4
        %s155 = scalar_lea.vmem %s0, %s154
        %s156 = smul.u32 32, %s11
      $region24: #{basic_block_pallas.4} parent=19 // pred_fallthru
        _
    $region20: #{basic_block_pallas.4} parent=5 // pred_fallthru
      _
    %p157 = scmp.le.s32.totalorder 1, %s11
    %p158 = scmp.lt.s32.totalorder %s11, 3
    %p159 = pnand %p157, %p158
    %p160 = pneg %p159
    // Predicated region
    $region25: #{basic_block_pallas.4} parent=5 // pred_check
      _
    $region26: #{basic_block_pallas.4} parent=5 // pred_check_branch
      %162 = sbr.rel (%p159) target = $region28
    $region27: #{basic_block_pallas.4} parent=5 // pred_region
      %s163 = ssub.s32 %s11, 1
      %s164 = smul.u32 32, %s16
      %p165 = scmp.lt.s32.totalorder %s164, 63
      %s166 = scalar_select %p165, %s164, 63
      %s167 = smul.addr %s166, 4
      %s168 = scalar_lea.vmem %s0, %s167
      %p169 = pneg %p37
      %p170 = pneg %p34
      %p171 = pneg %p58
      %p172 = pneg %p55
      %p173 = pneg %p84
      %p174 = pneg %p81
      %s175 = smul.u32 32, %s16
      %p176 = scmp.lt.s32.totalorder %s175, 63
      %s177 = scalar_select %p176, %s175, 63
      %s178 = smul.addr %s177, 8
      %s179 = scalar_lea.vmem %s2, %s178
      %p180 = pneg %p105
      %p181 = pneg %p102
      %p182 = pneg %p126
      %p183 = pneg %p123
      %s184 = smul.u32 32, %s16
      %p185 = scmp.lt.s32.totalorder %s184, 63
      %s186 = scalar_select %p185, %s184, 63
      %s187 = smul.addr %s186, 4
      %s188 = scalar_lea.vmem %s0, %s187
      %s189 = smul.u32 32, %s16
      %s190 = smul.u32 32, %s16
      %p191 = scmp.lt.s32.totalorder %s190, 63
      %s192 = scalar_select %p191, %s190, 63
      %s193 = smul.addr %s192, 8
      %s194 = scalar_lea.vmem %s2, %s193
      %s195 = smul.u32 32, %s16
      %v197 = vld [vmem:[%s188] sm:$0xf]
      %v198 = vld [vmem:[%s188 + $0x4] sm:$0xf]
      %v199 = vld [vmem:[%s188 + $0x8] sm:$0xf]
      %v200 = vld [vmem:[%s188 + $0xc] sm:$0xf]
      %v201 = vld [vmem:[%s188 + $0x10] sm:$0xf]
      %v202 = vld [vmem:[%s188 + $0x14] sm:$0xf]
      %v203 = vld [vmem:[%s188 + $0x18] sm:$0xf]
      %v204 = vld [vmem:[%s188 + $0x1c] sm:$0xf]
      %v205 = vld [vmem:[%s188 + $0x20] sm:$0xf]
      %v206 = vld [vmem:[%s188 + $0x24] sm:$0xf]
      %v207 = vld [vmem:[%s188 + $0x28] sm:$0xf]
      %v208 = vld [vmem:[%s188 + $0x2c] sm:$0xf]
      %v209 = vld [vmem:[%s188 + $0x30] sm:$0xf]
      %v210 = vld [vmem:[%s188 + $0x34] sm:$0xf]
      %v211 = vld [vmem:[%s188 + $0x38] sm:$0xf]
      %v212 = vld [vmem:[%s188 + $0x3c] sm:$0xf]
      %v213 = vld [vmem:[%s188 + $0x40] sm:$0xf]
      %v214 = vld [vmem:[%s188 + $0x44] sm:$0xf]
      %v215 = vld [vmem:[%s188 + $0x48] sm:$0xf]
      %v216 = vld [vmem:[%s188 + $0x4c] sm:$0xf]
      %v217 = vld [vmem:[%s188 + $0x50] sm:$0xf]
      %v218 = vld [vmem:[%s188 + $0x54] sm:$0xf]
      %v219 = vld [vmem:[%s188 + $0x58] sm:$0xf]
      %v220 = vld [vmem:[%s188 + $0x5c] sm:$0xf]
      %v221 = vld [vmem:[%s188 + $0x60] sm:$0xf]
      %v222 = vld [vmem:[%s188 + $0x64] sm:$0xf]
      %v223 = vld [vmem:[%s188 + $0x68] sm:$0xf]
      %v224 = vld [vmem:[%s188 + $0x6c] sm:$0xf]
      %v225 = vld [vmem:[%s188 + $0x70] sm:$0xf]
      %v226 = vld [vmem:[%s188 + $0x74] sm:$0xf]
      %v227 = vld [vmem:[%s188 + $0x78] sm:$0xf]
      %v228 = vld [vmem:[%s188 + $0x7c] sm:$0xf]
      %v229 = vld [vmem:[%s1] sm:$0xf]
      %v230 = vld [vmem:[%s1 + $0x4] sm:$0xf]
      %v231 = vld [vmem:[%s1 + $0x8] sm:$0xf]
      %v232 = vld [vmem:[%s1 + $0xc] sm:$0xf]
      %v233 = vld [vmem:[%s1 + $0x10] sm:$0xf]
      %v234 = vld [vmem:[%s1 + $0x14] sm:$0xf]
      %v235 = vld [vmem:[%s1 + $0x18] sm:$0xf]
      %v236 = vld [vmem:[%s1 + $0x1c] sm:$0xf]
      %v237 = vld [vmem:[%s1 + $0x20] sm:$0xf]
      %v238 = vld [vmem:[%s1 + $0x24] sm:$0xf]
      %v239 = vld [vmem:[%s1 + $0x28] sm:$0xf]
      %v240 = vld [vmem:[%s1 + $0x2c] sm:$0xf]
      %v241 = vld [vmem:[%s1 + $0x30] sm:$0xf]
      %v242 = vld [vmem:[%s1 + $0x34] sm:$0xf]
      %v243 = vld [vmem:[%s1 + $0x38] sm:$0xf]
      %v244 = vld [vmem:[%s1 + $0x3c] sm:$0xf]
      %v277 = vunpack.c.l.b16 %v197
      %v278 = vunpack.c.l.b16 %v198
      %v279 = vunpack.c.l.b16 %v199
      %v280 = vunpack.c.l.b16 %v200
      %v281 = vunpack.c.l.b16 %v201
      %v282 = vunpack.c.l.b16 %v202
      %v283 = vunpack.c.l.b16 %v203
      %v284 = vunpack.c.l.b16 %v204
      %v285 = vunpack.c.l.b16 %v205
      %v286 = vunpack.c.l.b16 %v206
      %v287 = vunpack.c.l.b16 %v207
      %v288 = vunpack.c.l.b16 %v208
      %v289 = vunpack.c.l.b16 %v209
      %v290 = vunpack.c.l.b16 %v210
      %v291 = vunpack.c.l.b16 %v211
      %v292 = vunpack.c.l.b16 %v212
      %v293 = vunpack.c.l.b16 %v213
      %v294 = vunpack.c.l.b16 %v214
      %v295 = vunpack.c.l.b16 %v215
      %v296 = vunpack.c.l.b16 %v216
      %v297 = vunpack.c.l.b16 %v217
      %v298 = vunpack.c.l.b16 %v218
      %v299 = vunpack.c.l.b16 %v219
      %v300 = vunpack.c.l.b16 %v220
      %v301 = vunpack.c.l.b16 %v221
      %v302 = vunpack.c.l.b16 %v222
      %v303 = vunpack.c.l.b16 %v223
      %v304 = vunpack.c.l.b16 %v224
      %v305 = vunpack.c.l.b16 %v225
      %v306 = vunpack.c.l.b16 %v226
      %v307 = vunpack.c.l.b16 %v227
      %v308 = vunpack.c.l.b16 %v228
      %v309 = vpack.c.b16 %v278, %v277
      %v310 = vpack.c.b16 %v280, %v279
      %v311 = vpack.c.b16 %v282, %v281
      %v312 = vpack.c.b16 %v284, %v283
      %v313 = vpack.c.b16 %v286, %v285
      %v314 = vpack.c.b16 %v288, %v287
      %v315 = vpack.c.b16 %v290, %v289
      %v316 = vpack.c.b16 %v292, %v291
      %v317 = vpack.c.b16 %v294, %v293
      %v318 = vpack.c.b16 %v296, %v295
      %v319 = vpack.c.b16 %v298, %v297
      %v320 = vpack.c.b16 %v300, %v299
      %v321 = vpack.c.b16 %v302, %v301
      %v322 = vpack.c.b16 %v304, %v303
      %v323 = vpack.c.b16 %v306, %v305
      %v324 = vpack.c.b16 %v308, %v307
      %v357 = vunpack.c.l.b16 %v229
      %v358 = vunpack.c.l.b16 %v230
      %v359 = vunpack.c.l.b16 %v231
      %v360 = vunpack.c.l.b16 %v232
      %v361 = vunpack.c.l.b16 %v233
      %v362 = vunpack.c.l.b16 %v234
      %v363 = vunpack.c.l.b16 %v235
      %v364 = vunpack.c.l.b16 %v236
      %v365 = vunpack.c.l.b16 %v237
      %v366 = vunpack.c.l.b16 %v238
      %v367 = vunpack.c.l.b16 %v239
      %v368 = vunpack.c.l.b16 %v240
      %v369 = vunpack.c.l.b16 %v241
      %v370 = vunpack.c.l.b16 %v242
      %v371 = vunpack.c.l.b16 %v243
      %v372 = vunpack.c.l.b16 %v244
      %v373 = vpack.c.b16 %v358, %v357
      %v374 = vpack.c.b16 %v360, %v359
      %v375 = vpack.c.b16 %v362, %v361
      %v376 = vpack.c.b16 %v364, %v363
      %v377 = vpack.c.b16 %v366, %v365
      %v378 = vpack.c.b16 %v368, %v367
      %v379 = vpack.c.b16 %v370, %v369
      %v380 = vpack.c.b16 %v372, %v371
      %389 = vmatprep.subr.bf16.mxu0 0
      %390 = vmatpush1.bf16.msra.mxu0 %v380
      %391 = vmatprep.subr.bf16.mxu0 0
      %392 = vmatpush1.bf16.msra.mxu0 %v379
      %393 = vmatprep.subr.bf16.mxu0 0
      %394 = vmatpush1.bf16.msra.mxu0 %v378
      %395 = vmatprep.subr.bf16.mxu0 0
      %396 = vmatpush1.bf16.msra.mxu0 %v377
      %397 = vmatprep.subr.bf16.mxu0 0
      %398 = vmatpush1.bf16.msra.mxu0 %v376
      %399 = vmatprep.subr.bf16.mxu0 0
      %400 = vmatpush1.bf16.msra.mxu0 %v375
      %401 = vmatprep.subr.bf16.mxu0 0
      %402 = vmatpush1.bf16.msra.mxu0 %v374
      %403 = vmatprep.subr.bf16.mxu0 0
      %404 = vmatpush1.bf16.msra.mxu0 %v373
      %405 = vmatprep.subr.bf16.mxu0 0
      %406 = vmatpush2.bf16.msra.mxu0 0
      %407 = vmatprep.subr.bf16.mxu0 0
      %408 = vmatpush2.bf16.msra.mxu0 0
      %409 = vmatprep.subr.bf16.mxu0 0
      %410 = vmatpush2.bf16.msra.mxu0 0
      %411 = vmatprep.subr.bf16.mxu0 0
      %412 = vmatpush2.bf16.msra.mxu0 0
      %413 = vmatprep.subr.bf16.mxu0 0
      %414 = vmatpush2.bf16.msra.mxu0 0
      %415 = vmatprep.subr.bf16.mxu0 0
      %416 = vmatpush2.bf16.msra.mxu0 0
      %417 = vmatprep.subr.bf16.mxu0 0
      %418 = vmatpush2.bf16.msra.mxu0 0
      %419 = vmatprep.subr.bf16.mxu0 0
      %420 = vmatpush2.bf16.msra.mxu0 0
      %421 = vmatprep.mubr.bf16.mxu0 0
      %422 = vmatmul.mubr.bf16.gmra.mxu0 %v309
      %v423 = vpop.f32.mrf.mxu0
      %v424 = vadd.f32 0.0, %v423
      %v425 = vpop.f32.mrf.mxu0
      %v426 = vpop.f32.mrf.mxu0
      %v427 = vadd.f32 0.0, %v426
      %v428 = vpop.f32.mrf.mxu0
      %429 = vmatprep.mubr.bf16.mxu0 0
      %430 = vmatmul.mubr.bf16.gmra.mxu0 %v310
      %v431 = vpop.f32.mrf.mxu0
      %v432 = vadd.f32 0.0, %v431
      %v433 = vpop.f32.mrf.mxu0
      %v434 = vpop.f32.mrf.mxu0
      %v435 = vadd.f32 0.0, %v434
      %v436 = vpop.f32.mrf.mxu0
      %437 = vmatprep.mubr.bf16.mxu0 0
      %438 = vmatmul.mubr.bf16.gmra.mxu0 %v311
      %v439 = vpop.f32.mrf.mxu0
      %v440 = vadd.f32 0.0, %v439
      %v441 = vpop.f32.mrf.mxu0
      %v442 = vpop.f32.mrf.mxu0
      %v443 = vadd.f32 0.0, %v442
      %v444 = vpop.f32.mrf.mxu0
      %445 = vmatprep.mubr.bf16.mxu0 0
      %446 = vmatmul.mubr.bf16.gmra.mxu0 %v312
      %v447 = vpop.f32.mrf.mxu0
      %v448 = vadd.f32 0.0, %v447
      %v449 = vpop.f32.mrf.mxu0
      %v450 = vpop.f32.mrf.mxu0
      %v451 = vadd.f32 0.0, %v450
      %v452 = vpop.f32.mrf.mxu0
      %453 = vmatprep.mubr.bf16.mxu0 0
      %454 = vmatmul.mubr.bf16.gmra.mxu0 %v313
      %v455 = vpop.f32.mrf.mxu0
      %v456 = vadd.f32 0.0, %v455
      %v457 = vpop.f32.mrf.mxu0
      %v458 = vpop.f32.mrf.mxu0
      %v459 = vadd.f32 0.0, %v458
      %v460 = vpop.f32.mrf.mxu0
      %461 = vmatprep.mubr.bf16.mxu0 0
      %462 = vmatmul.mubr.bf16.gmra.mxu0 %v314
      %v463 = vpop.f32.mrf.mxu0
      %v464 = vadd.f32 0.0, %v463
      %v465 = vpop.f32.mrf.mxu0
      %v466 = vpop.f32.mrf.mxu0
      %v467 = vadd.f32 0.0, %v466
      %v468 = vpop.f32.mrf.mxu0
      %469 = vmatprep.mubr.bf16.mxu0 0
      %470 = vmatmul.mubr.bf16.gmra.mxu0 %v315
      %v471 = vpop.f32.mrf.mxu0
      %v472 = vadd.f32 0.0, %v471
      %v473 = vpop.f32.mrf.mxu0
      %v474 = vpop.f32.mrf.mxu0
      %v475 = vadd.f32 0.0, %v474
      %v476 = vpop.f32.mrf.mxu0
      %477 = vmatprep.mubr.bf16.mxu0 0
      %478 = vmatmul.mubr.bf16.gmra.mxu0 %v316
      %v479 = vpop.f32.mrf.mxu0
      %v480 = vadd.f32 0.0, %v479
      %v481 = vpop.f32.mrf.mxu0
      %v482 = vpop.f32.mrf.mxu0
      %v483 = vadd.f32 0.0, %v482
      %v484 = vpop.f32.mrf.mxu0
      %485 = vmatprep.mubr.bf16.mxu0 0
      %486 = vmatmul.mubr.bf16.gmra.mxu0 %v317
      %v487 = vpop.f32.mrf.mxu0
      %v488 = vadd.f32 0.0, %v487
      %v489 = vpop.f32.mrf.mxu0
      %v490 = vpop.f32.mrf.mxu0
      %v491 = vadd.f32 0.0, %v490
      %v492 = vpop.f32.mrf.mxu0
      %493 = vmatprep.mubr.bf16.mxu0 0
      %494 = vmatmul.mubr.bf16.gmra.mxu0 %v318
      %v495 = vpop.f32.mrf.mxu0
      %v496 = vadd.f32 0.0, %v495
      %v497 = vpop.f32.mrf.mxu0
      %v498 = vpop.f32.mrf.mxu0
      %v499 = vadd.f32 0.0, %v498
      %v500 = vpop.f32.mrf.mxu0
      %501 = vmatprep.mubr.bf16.mxu0 0
      %502 = vmatmul.mubr.bf16.gmra.mxu0 %v319
      %v503 = vpop.f32.mrf.mxu0
      %v504 = vadd.f32 0.0, %v503
      %v505 = vpop.f32.mrf.mxu0
      %v506 = vpop.f32.mrf.mxu0
      %v507 = vadd.f32 0.0, %v506
      %v508 = vpop.f32.mrf.mxu0
      %509 = vmatprep.mubr.bf16.mxu0 0
      %510 = vmatmul.mubr.bf16.gmra.mxu0 %v320
      %v511 = vpop.f32.mrf.mxu0
      %v512 = vadd.f32 0.0, %v511
      %v513 = vpop.f32.mrf.mxu0
      %v514 = vpop.f32.mrf.mxu0
      %v515 = vadd.f32 0.0, %v514
      %v516 = vpop.f32.mrf.mxu0
      %517 = vmatprep.mubr.bf16.mxu0 0
      %518 = vmatmul.mubr.bf16.gmra.mxu0 %v321
      %v519 = vpop.f32.mrf.mxu0
      %v520 = vadd.f32 0.0, %v519
      %v521 = vpop.f32.mrf.mxu0
      %v522 = vpop.f32.mrf.mxu0
      %v523 = vadd.f32 0.0, %v522
      %v524 = vpop.f32.mrf.mxu0
      %525 = vmatprep.mubr.bf16.mxu0 0
      %526 = vmatmul.mubr.bf16.gmra.mxu0 %v322
      %v527 = vpop.f32.mrf.mxu0
      %v528 = vadd.f32 0.0, %v527
      %v529 = vpop.f32.mrf.mxu0
      %v530 = vpop.f32.mrf.mxu0
      %v531 = vadd.f32 0.0, %v530
      %v532 = vpop.f32.mrf.mxu0
      %533 = vmatprep.mubr.bf16.mxu0 0
      %534 = vmatmul.mubr.bf16.gmra.mxu0 %v323
      %v535 = vpop.f32.mrf.mxu0
      %v536 = vadd.f32 0.0, %v535
      %v537 = vpop.f32.mrf.mxu0
      %v538 = vpop.f32.mrf.mxu0
      %v539 = vadd.f32 0.0, %v538
      %v540 = vpop.f32.mrf.mxu0
      %541 = vmatprep.mubr.bf16.mxu0 0
      %542 = vmatmul.mubr.bf16.gmra.mxu0 %v324
      %v543 = vpop.f32.mrf.mxu0
      %v544 = vadd.f32 0.0, %v543
      %v545 = vpop.f32.mrf.mxu0
      %v546 = vpop.f32.mrf.mxu0
      %v547 = vadd.f32 0.0, %v546
      %v548 = vpop.f32.mrf.mxu0
      %549 = vdwg.mxu0
      %550 = vst [vmem:[%s194] sm:$0xff] %v424
      %551 = vst [vmem:[%s194 + $0x8] sm:$0xff] %v427
      %552 = vst [vmem:[%s194 + $0x10] sm:$0xff] %v432
      %553 = vst [vmem:[%s194 + $0x18] sm:$0xff] %v435
      %554 = vst [vmem:[%s194 + $0x20] sm:$0xff] %v440
      %555 = vst [vmem:[%s194 + $0x28] sm:$0xff] %v443
      %556 = vst [vmem:[%s194 + $0x30] sm:$0xff] %v448
      %557 = vst [vmem:[%s194 + $0x38] sm:$0xff] %v451
      %558 = vst [vmem:[%s194 + $0x40] sm:$0xff] %v456
      %559 = vst [vmem:[%s194 + $0x48] sm:$0xff] %v459
      %560 = vst [vmem:[%s194 + $0x50] sm:$0xff] %v464
      %561 = vst [vmem:[%s194 + $0x58] sm:$0xff] %v467
      %562 = vst [vmem:[%s194 + $0x60] sm:$0xff] %v472
      %563 = vst [vmem:[%s194 + $0x68] sm:$0xff] %v475
      %564 = vst [vmem:[%s194 + $0x70] sm:$0xff] %v480
      %565 = vst [vmem:[%s194 + $0x78] sm:$0xff] %v483
      %566 = vst [vmem:[%s194 + $0x80] sm:$0xff] %v488
      %567 = vst [vmem:[%s194 + $0x88] sm:$0xff] %v491
      %568 = vst [vmem:[%s194 + $0x90] sm:$0xff] %v496
      %569 = vst [vmem:[%s194 + $0x98] sm:$0xff] %v499
      %570 = vst [vmem:[%s194 + $0xa0] sm:$0xff] %v504
      %571 = vst [vmem:[%s194 + $0xa8] sm:$0xff] %v507
      %572 = vst [vmem:[%s194 + $0xb0] sm:$0xff] %v512
      %573 = vst [vmem:[%s194 + $0xb8] sm:$0xff] %v515
      %574 = vst [vmem:[%s194 + $0xc0] sm:$0xff] %v520
      %575 = vst [vmem:[%s194 + $0xc8] sm:$0xff] %v523
      %576 = vst [vmem:[%s194 + $0xd0] sm:$0xff] %v528
      %577 = vst [vmem:[%s194 + $0xd8] sm:$0xff] %v531
      %578 = vst [vmem:[%s194 + $0xe0] sm:$0xff] %v536
      %579 = vst [vmem:[%s194 + $0xe8] sm:$0xff] %v539
      %580 = vst [vmem:[%s194 + $0xf0] sm:$0xff] %v544
      %581 = vst [vmem:[%s194 + $0xf8] sm:$0xff] %v547
      %p582 = scmp.eq.s32.totalorder %s16, 0
      // Predicated region
      $region29: #{basic_block_pallas.4} parent=27 // pred_check
        %p583 = pneg %p582
      $region30: #{basic_block_pallas.4} parent=27 // pred_check_branch
        %585 = sbr.rel (%p583) target = $region32
      $region31: #{basic_block_pallas.4} parent=27 // pred_region
        %586 = vst [vmem:[%s3] sm:$0x1] 0.0
        %587 = vst [vmem:[%s4] sm:$0x1] 0.0
      $region32: #{basic_block_pallas.4} parent=27 // pred_fallthru
        _
      %v588 = vld [vmem:[%s3] sm:$0x1]
      %v589 = vadd.f32 %v424, %v427
      %v590 = vadd.f32 %v589, %v432
      %v591 = vadd.f32 %v590, %v435
      %v592 = vadd.f32 %v591, %v440
      %v593 = vadd.f32 %v592, %v443
      %v594 = vadd.f32 %v593, %v448
      %v595 = vadd.f32 %v594, %v451
      %v596 = vadd.f32 %v595, %v456
      %v597 = vadd.f32 %v596, %v459
      %v598 = vadd.f32 %v597, %v464
      %v599 = vadd.f32 %v598, %v467
      %v600 = vadd.f32 %v599, %v472
      %v601 = vadd.f32 %v600, %v475
      %v602 = vadd.f32 %v601, %v480
      %v603 = vadd.f32 %v602, %v483
      %v604 = vadd.f32 %v603, %v488
      %v605 = vadd.f32 %v604, %v491
      %v606 = vadd.f32 %v605, %v496
      %v607 = vadd.f32 %v606, %v499
      %v608 = vadd.f32 %v607, %v504
      %v609 = vadd.f32 %v608, %v507
      %v610 = vadd.f32 %v609, %v512
      %v611 = vadd.f32 %v610, %v515
      %v612 = vadd.f32 %v611, %v520
      %v613 = vadd.f32 %v612, %v523
      %v614 = vadd.f32 %v613, %v528
      %v615 = vadd.f32 %v614, %v531
      %v616 = vadd.f32 %v615, %v536
      %v617 = vadd.f32 %v616, %v539
      %v618 = vadd.f32 %v617, %v544
      %v619 = vadd.f32 %v618, %v547
      %v620 = vrot.slane %v619, 4
      %v621 = vadd.f32 %v619, %v620
      %v622 = vrot.slane %v621, 2
      %v623 = vadd.f32 %v621, %v622
      %v624 = vrot.slane %v623, 1
      %v625 = vadd.f32 %v623, %v624
      %v626 = vadd.f32 %v588, %v625
      %627 = vst [vmem:[%s3] sm:$0x1] %v626
      %v628 = vld [vmem:[%s4] sm:$0x1]
      %v629 = vmul.f32 %v424, %v424
      %v630 = vmul.f32 %v427, %v427
      %v631 = vmul.f32 %v432, %v432
      %v632 = vmul.f32 %v435, %v435
      %v633 = vmul.f32 %v440, %v440
      %v634 = vmul.f32 %v443, %v443
      %v635 = vmul.f32 %v448, %v448
      %v636 = vmul.f32 %v451, %v451
      %v637 = vmul.f32 %v456, %v456
      %v638 = vmul.f32 %v459, %v459
      %v639 = vmul.f32 %v464, %v464
      %v640 = vmul.f32 %v467, %v467
      %v641 = vmul.f32 %v472, %v472
      %v642 = vmul.f32 %v475, %v475
      %v643 = vmul.f32 %v480, %v480
      %v644 = vmul.f32 %v483, %v483
      %v645 = vmul.f32 %v488, %v488
      %v646 = vmul.f32 %v491, %v491
      %v647 = vmul.f32 %v496, %v496
      %v648 = vmul.f32 %v499, %v499
      %v649 = vmul.f32 %v504, %v504
      %v650 = vmul.f32 %v507, %v507
      %v651 = vmul.f32 %v512, %v512
      %v652 = vmul.f32 %v515, %v515
      %v653 = vmul.f32 %v520, %v520
      %v654 = vmul.f32 %v523, %v523
      %v655 = vmul.f32 %v528, %v528
      %v656 = vmul.f32 %v531, %v531
      %v657 = vmul.f32 %v536, %v536
      %v658 = vmul.f32 %v539, %v539
      %v659 = vmul.f32 %v544, %v544
      %v660 = vmul.f32 %v547, %v547
      %v661 = vadd.f32 %v629, %v630
      %v662 = vadd.f32 %v661, %v631
      %v663 = vadd.f32 %v662, %v632
      %v664 = vadd.f32 %v663, %v633
      %v665 = vadd.f32 %v664, %v634
      %v666 = vadd.f32 %v665, %v635
      %v667 = vadd.f32 %v666, %v636
      %v668 = vadd.f32 %v667, %v637
      %v669 = vadd.f32 %v668, %v638
      %v670 = vadd.f32 %v669, %v639
      %v671 = vadd.f32 %v670, %v640
      %v672 = vadd.f32 %v671, %v641
      %v673 = vadd.f32 %v672, %v642
      %v674 = vadd.f32 %v673, %v643
      %v675 = vadd.f32 %v674, %v644
      %v676 = vadd.f32 %v675, %v645
      %v677 = vadd.f32 %v676, %v646
      %v678 = vadd.f32 %v677, %v647
      %v679 = vadd.f32 %v678, %v648
      %v680 = vadd.f32 %v679, %v649
      %v681 = vadd.f32 %v680, %v650
      %v682 = vadd.f32 %v681, %v651
      %v683 = vadd.f32 %v682, %v652
      %v684 = vadd.f32 %v683, %v653
      %v685 = vadd.f32 %v684, %v654
      %v686 = vadd.f32 %v685, %v655
      %v687 = vadd.f32 %v686, %v656
      %v688 = vadd.f32 %v687, %v657
      %v689 = vadd.f32 %v688, %v658
      %v690 = vadd.f32 %v689, %v659
      %v691 = vadd.f32 %v690, %v660
      %v692 = vrot.slane %v691, 4
      %v693 = vadd.f32 %v691, %v692
      %v694 = vrot.slane %v693, 2
      %v695 = vadd.f32 %v693, %v694
      %v696 = vrot.slane %v695, 1
      %v697 = vadd.f32 %v695, %v696
      %v698 = vadd.f32 %v628, %v697
      %699 = vst [vmem:[%s4] sm:$0x1] %v698
      %s700 = smul.u32 32, %s16
      %p701 = scmp.lt.s32.totalorder %s700, 63
      %s702 = scalar_select %p701, %s700, 63
      %s703 = smul.addr %s702, 8
      %s704 = scalar_lea.vmem %s2, %s703
      // Predicated region
      $region33: #{basic_block_pallas.4} parent=27 // pred_check
        %p705 = pneg %p81
      $region34: #{basic_block_pallas.4} parent=27 // pred_check_branch
        %707 = sbr.rel (%p705) target = $region36
      $region35: #{basic_block_pallas.4} parent=27 // pred_region
        %s708 = smul.u32 32, %s16
      $region36: #{basic_block_pallas.4} parent=27 // pred_fallthru
        _
      // Predicated region
      $region37: #{basic_block_pallas.4} parent=27 // pred_check
        %p709 = pneg %p102
      $region38: #{basic_block_pallas.4} parent=27 // pred_check_branch
        %711 = sbr.rel (%p709) target = $region40
      $region39: #{basic_block_pallas.4} parent=27 // pred_region
        _
      $region40: #{basic_block_pallas.4} parent=27 // pred_fallthru
        _
      // Predicated region
      $region41: #{basic_block_pallas.4} parent=27 // pred_check
        %p712 = pneg %p123
      $region42: #{basic_block_pallas.4} parent=27 // pred_check_branch
        %714 = sbr.rel (%p712) target = $region44
      $region43: #{basic_block_pallas.4} parent=27 // pred_region
        _
      $region44: #{basic_block_pallas.4} parent=27 // pred_fallthru
        _
      // Predicated region
      $region45: #{basic_block_pallas.4} parent=27 // pred_check
        %p715 = pneg %p102
      $region46: #{basic_block_pallas.4} parent=27 // pred_check_branch
        %717 = sbr.rel (%p715) target = $region48
      $region47: #{basic_block_pallas.4} parent=27 // pred_region
        _
      $region48: #{basic_block_pallas.4} parent=27 // pred_fallthru
        _
      // Predicated region
      $region49: #{basic_block_pallas.4} parent=27 // pred_check
        %p718 = pneg %p123
      $region50: #{basic_block_pallas.4} parent=27 // pred_check_branch
        %720 = sbr.rel (%p718) target = $region52
      $region51: #{basic_block_pallas.4} parent=27 // pred_region
        _
      $region52: #{basic_block_pallas.4} parent=27 // pred_fallthru
        _
    $region28: #{basic_block_pallas.4} parent=5 // pred_fallthru
      _
    %p721 = scmp.le.s32.totalorder 2, %s11
    // Predicated region
    $region53: #{basic_block_pallas.4} parent=5 // pred_check
      %p722 = pneg %p721
    $region54: #{basic_block_pallas.4} parent=5 // pred_check_branch
      %724 = sbr.rel (%p722) target = $region56
    $region55: #{basic_block_pallas.4} parent=5 // pred_region
      %s725 = ssub.s32 %s11, 2
      // Predicated region
      $region57: #{basic_block_pallas.4} parent=55 // pred_check
        %p726 = pneg %p87
      $region58: #{basic_block_pallas.4} parent=55 // pred_check_branch
        %728 = sbr.rel (%p726) target = $region60
      $region59: #{basic_block_pallas.4} parent=55 // pred_region
        %s729 = smul.u32 32, %s17
        %p730 = scmp.lt.s32.totalorder %s729, 63
        %s731 = scalar_select %p730, %s729, 63
        %s732 = smul.addr %s731, 8
        %s733 = scalar_lea.vmem %s2, %s732
      $region60: #{basic_block_pallas.4} parent=55 // pred_fallthru
        _
    $region56: #{basic_block_pallas.4} parent=5 // pred_fallthru
      _
  $region6: #{basic_block_pallas.4} parent=0 // loop_footer
    %s15 = sadd.s32 1, %s11
  $region7: #{basic_block_pallas.4} parent=0 // loop_footer_branch
    %10 = sbr.rel target = $region3
  $region8: #{basic_block_pallas.4} parent=0 // loop_exit
    _

// kernel: basic_block_pallas.7
$region0: #{basic_block_pallas.7}
  #allocation0 [shape = 'u32[]', space=smem, size = 0x4, offset = 0x4, fixed_abs, tag = 'smem constant byte address 0x4 - core index']
  #allocation1 [shape = 'u32[144,128]{1,0:T(1,128)}', space=vmem, size = 0x12000, scoped, tag = 'internal scratch']
  %s0 = inlined_call_operand.vmem [shape: f32[512,128], index: 0, kind: input, shape index: {}]
  %s1 = inlined_call_operand.vmem [shape: f32[1,128], index: 1, kind: input, shape index: {}]
  %s2 = inlined_call_operand.vmem [shape: f32[1,128], index: 2, kind: input, shape index: {}]
  %s3 = inlined_call_operand.vmem [shape: f32[512,128], index: 3, kind: input, shape index: {}]
  %s4 = inlined_call_operand.vmem [shape: f32[1,128], index: 4, kind: input, shape index: {}]
  %s5 = inlined_call_operand.vmem [shape: f32[1,128], index: 5, kind: input, shape index: {}]
  %s6 = inlined_call_operand.vmem [shape: f32[512,128], index: 6, kind: output, shape index: {}]
  %s7 = sld [smem:[#allocation0]]
  $region57: #{basic_block_pallas.7} parent=0
    _
  %s9 = ssub.s32 1, %s7
  %s10 = scalar_select 0, %s9, %s7
  loop: start=0, step=1, limit=4
  $region2: #{basic_block_pallas.7} parent=0 // loop_pre_header
    _
  $region3: #{basic_block_pallas.7} parent=0 // loop_header
    %s12 = sphi 0, %s16
    %p13 = scmp.ge.s32.totalorder %s12, 4
    %s22 = sphi 0, %s24
    %s25 = sphi 0, %s22
    %s26 = sphi 0, %s25
    %s42 = sphi 0, %s26
    %s46 = sphi 0, %s46
    %s48 = sphi 0, %s46
    %s49 = sphi 0, %s48
    %s63 = sphi 0, %s49
    %s67 = sphi 0, %s67
    %s69 = sphi 0, %s67
    %s70 = sphi 0, %s69
    %s84 = sphi 0, %s70
    %s90 = sphi 0, %s92
    %s93 = sphi 0, %s90
    %s94 = sphi 0, %s93
    %s110 = sphi 0, %s94
    %s114 = sphi 0, %s114
    %s116 = sphi 0, %s114
    %s117 = sphi 0, %s116
    %s131 = sphi 0, %s117
    %s135 = sphi 0, %s135
    %s137 = sphi 0, %s135
    %s138 = sphi 0, %s137
    %s152 = sphi 0, %s138
    %s158 = sphi 0, %s160
    %s161 = sphi 0, %s158
    %s162 = sphi 0, %s161
    %s178 = sphi 0, %s162
  $region4: #{basic_block_pallas.7} parent=0 // loop_header_branch
    %15 = sbr.rel (%p13) target = $region8
  $region5: #{basic_block_pallas.7} parent=0 // loop_body
    %s17 = ssub.s32 %s12, 1
    %s18 = ssub.s32 %s12, 2
    %s19 = sadd.s32 %s12, 1
    %s20 = ssub.s32 %s12, %s19
    %p21 = scmp.eq.s32.totalorder %s20, 0
    %s23 = sadd.s32 %s22, 1
    %s24 = scalar_select %p21, %s22, %s23
    %p27 = pneg %p21
    %p28 = scmp.eq.s32.totalorder %s12, 1
    %p29 = por %p27, %p28
    %p30 = scmp.ne.s32.totalorder %s22, %s25
    %p31 = scmp.eq.s32.totalorder %s12, 0
    %p32 = por %p30, %p31
    %p33 = scmp.ne.s32.totalorder %s22, %s25
    %p34 = scmp.eq.s32.totalorder %s17, 1
    %p35 = por %p33, %p34
    %p36 = scmp.ne.s32.totalorder %s25, %s26
    %p37 = scmp.eq.s32.totalorder %s17, 0
    %p38 = por %p36, %p37
    %p39 = scmp.ne.s32.totalorder %s25, %s26
    %p40 = scmp.eq.s32.totalorder %s18, 1
    %p41 = por %p39, %p40
    %p43 = scmp.ne.s32.totalorder %s26, %s42
    %p44 = scmp.eq.s32.totalorder %s18, 0
    %p45 = por %p43, %p44
    %s47 = sadd.s32 %s46, 1
    %p50 = scmp.eq.s32.totalorder %s12, 1
    %p51 = scmp.ne.s32.totalorder %s46, %s48
    %p52 = scmp.eq.s32.totalorder %s12, 0
    %p53 = por %p51, %p52
    %p54 = scmp.ne.s32.totalorder %s46, %s48
    %p55 = scmp.eq.s32.totalorder %s17, 1
    %p56 = por %p54, %p55
    %p57 = scmp.ne.s32.totalorder %s48, %s49
    %p58 = scmp.eq.s32.totalorder %s17, 0
    %p59 = por %p57, %p58
    %p60 = scmp.ne.s32.totalorder %s48, %s49
    %p61 = scmp.eq.s32.totalorder %s18, 1
    %p62 = por %p60, %p61
    %p64 = scmp.ne.s32.totalorder %s49, %s63
    %p65 = scmp.eq.s32.totalorder %s18, 0
    %p66 = por %p64, %p65
    %s68 = sadd.s32 %s67, 1
    %p71 = scmp.eq.s32.totalorder %s12, 1
    %p72 = scmp.ne.s32.totalorder %s67, %s69
    %p73 = scmp.eq.s32.totalorder %s12, 0
    %p74 = por %p72, %p73
    %p75 = scmp.ne.s32.totalorder %s67, %s69
    %p76 = scmp.eq.s32.totalorder %s17, 1
    %p77 = por %p75, %p76
    %p78 = scmp.ne.s32.totalorder %s69, %s70
    %p79 = scmp.eq.s32.totalorder %s17, 0
    %p80 = por %p78, %p79
    %p81 = scmp.ne.s32.totalorder %s69, %s70
    %p82 = scmp.eq.s32.totalorder %s18, 1
    %p83 = por %p81, %p82
    %p85 = scmp.ne.s32.totalorder %s70, %s84
    %p86 = scmp.eq.s32.totalorder %s18, 0
    %p87 = por %p85, %p86
    %s88 = ssub.s32 %s12, %s19
    %p89 = scmp.eq.s32.totalorder %s88, 0
    %s91 = sadd.s32 %s90, 1
    %s92 = scalar_select %p89, %s90, %s91
    %p95 = pneg %p89
    %p96 = scmp.eq.s32.totalorder %s12, 1
    %p97 = por %p95, %p96
    %p98 = scmp.ne.s32.totalorder %s90, %s93
    %p99 = scmp.eq.s32.totalorder %s12, 0
    %p100 = por %p98, %p99
    %p101 = scmp.ne.s32.totalorder %s90, %s93
    %p102 = scmp.eq.s32.totalorder %s17, 1
    %p103 = por %p101, %p102
    %p104 = scmp.ne.s32.totalorder %s93, %s94
    %p105 = scmp.eq.s32.totalorder %s17, 0
    %p106 = por %p104, %p105
    %p107 = scmp.ne.s32.totalorder %s93, %s94
    %p108 = scmp.eq.s32.totalorder %s18, 1
    %p109 = por %p107, %p108
    %p111 = scmp.ne.s32.totalorder %s94, %s110
    %p112 = scmp.eq.s32.totalorder %s18, 0
    %p113 = por %p111, %p112
    %s115 = sadd.s32 %s114, 1
    %p118 = scmp.eq.s32.totalorder %s12, 1
    %p119 = scmp.ne.s32.totalorder %s114, %s116
    %p120 = scmp.eq.s32.totalorder %s12, 0
    %p121 = por %p119, %p120
    %p122 = scmp.ne.s32.totalorder %s114, %s116
    %p123 = scmp.eq.s32.totalorder %s17, 1
    %p124 = por %p122, %p123
    %p125 = scmp.ne.s32.totalorder %s116, %s117
    %p126 = scmp.eq.s32.totalorder %s17, 0
    %p127 = por %p125, %p126
    %p128 = scmp.ne.s32.totalorder %s116, %s117
    %p129 = scmp.eq.s32.totalorder %s18, 1
    %p130 = por %p128, %p129
    %p132 = scmp.ne.s32.totalorder %s117, %s131
    %p133 = scmp.eq.s32.totalorder %s18, 0
    %p134 = por %p132, %p133
    %s136 = sadd.s32 %s135, 1
    %p139 = scmp.eq.s32.totalorder %s12, 1
    %p140 = scmp.ne.s32.totalorder %s135, %s137
    %p141 = scmp.eq.s32.totalorder %s12, 0
    %p142 = por %p140, %p141
    %p143 = scmp.ne.s32.totalorder %s135, %s137
    %p144 = scmp.eq.s32.totalorder %s17, 1
    %p145 = por %p143, %p144
    %p146 = scmp.ne.s32.totalorder %s137, %s138
    %p147 = scmp.eq.s32.totalorder %s17, 0
    %p148 = por %p146, %p147
    %p149 = scmp.ne.s32.totalorder %s137, %s138
    %p150 = scmp.eq.s32.totalorder %s18, 1
    %p151 = por %p149, %p150
    %p153 = scmp.ne.s32.totalorder %s138, %s152
    %p154 = scmp.eq.s32.totalorder %s18, 0
    %p155 = por %p153, %p154
    %s156 = ssub.s32 %s12, %s19
    %p157 = scmp.eq.s32.totalorder %s156, 0
    %s159 = sadd.s32 %s158, 1
    %s160 = scalar_select %p157, %s158, %s159
    %p163 = pneg %p157
    %p164 = scmp.eq.s32.totalorder %s12, 1
    %p165 = por %p163, %p164
    %p166 = scmp.ne.s32.totalorder %s158, %s161
    %p167 = scmp.eq.s32.totalorder %s12, 0
    %p168 = por %p166, %p167
    %p169 = scmp.ne.s32.totalorder %s158, %s161
    %p170 = scmp.eq.s32.totalorder %s17, 1
    %p171 = por %p169, %p170
    %p172 = scmp.ne.s32.totalorder %s161, %s162
    %p173 = scmp.eq.s32.totalorder %s17, 0
    %p174 = por %p172, %p173
    %p175 = scmp.ne.s32.totalorder %s161, %s162
    %p176 = scmp.eq.s32.totalorder %s18, 1
    %p177 = por %p175, %p176
    %p179 = scmp.ne.s32.totalorder %s162, %s178
    %p180 = scmp.eq.s32.totalorder %s18, 0
    %p181 = por %p179, %p180
    %p182 = scmp.le.s32.totalorder 1, %s12
    %p183 = scmp.lt.s32.totalorder %s12, 3
    %p184 = pnand %p182, %p183
    %p185 = pneg %p184
    // Predicated region
    $region9: #{basic_block_pallas.7} parent=5 // pred_check
      _
    $region10: #{basic_block_pallas.7} parent=5 // pred_check_branch
      %187 = sbr.rel (%p184) target = $region12
    $region11: #{basic_block_pallas.7} parent=5 // pred_region
      %s188 = ssub.s32 %s12, 1
      // Predicated region
      $region13: #{basic_block_pallas.7} parent=11 // pred_check
        %p189 = pneg %p59
      $region14: #{basic_block_pallas.7} parent=11 // pred_check_branch
        %191 = sbr.rel (%p189) target = $region16
      $region15: #{basic_block_pallas.7} parent=11 // pred_region
        _
      $region16: #{basic_block_pallas.7} parent=11 // pred_fallthru
        _
      // Predicated region
      $region17: #{basic_block_pallas.7} parent=11 // pred_check
        %p192 = pneg %p80
      $region18: #{basic_block_pallas.7} parent=11 // pred_check_branch
        %194 = sbr.rel (%p192) target = $region20
      $region19: #{basic_block_pallas.7} parent=11 // pred_region
        _
      $region20: #{basic_block_pallas.7} parent=11 // pred_fallthru
        _
      // Predicated region
      $region21: #{basic_block_pallas.7} parent=11 // pred_check
        %p195 = pneg %p127
      $region22: #{basic_block_pallas.7} parent=11 // pred_check_branch
        %197 = sbr.rel (%p195) target = $region24
      $region23: #{basic_block_pallas.7} parent=11 // pred_region
        _
      $region24: #{basic_block_pallas.7} parent=11 // pred_fallthru
        _
      // Predicated region
      $region25: #{basic_block_pallas.7} parent=11 // pred_check
        %p198 = pneg %p148
      $region26: #{basic_block_pallas.7} parent=11 // pred_check_branch
        %200 = sbr.rel (%p198) target = $region28
      $region27: #{basic_block_pallas.7} parent=11 // pred_region
        _
      $region28: #{basic_block_pallas.7} parent=11 // pred_fallthru
        _
    $region12: #{basic_block_pallas.7} parent=5 // pred_fallthru
      _
    %p201 = scmp.lt.s32.totalorder %s12, 2
    // Predicated region
    $region29: #{basic_block_pallas.7} parent=5 // pred_check
      %p202 = pneg %p201
    $region30: #{basic_block_pallas.7} parent=5 // pred_check_branch
      %204 = sbr.rel (%p202) target = $region32
    $region31: #{basic_block_pallas.7} parent=5 // pred_region
      // Predicated region
      $region33: #{basic_block_pallas.7} parent=31 // pred_check
        %p205 = pneg %p32
      $region34: #{basic_block_pallas.7} parent=31 // pred_check_branch
        %207 = sbr.rel (%p205) target = $region36
      $region35: #{basic_block_pallas.7} parent=31 // pred_region
        %s208 = smul.u32 32, %s12
        %p209 = scmp.lt.s32.totalorder %s208, 63
        %s210 = scalar_select %p209, %s208, 63
        %s211 = smul.addr %s210, 8
        %s212 = scalar_lea.vmem %s0, %s211
        %s213 = smul.u32 32, %s12
      $region36: #{basic_block_pallas.7} parent=31 // pred_fallthru
        _
      // Predicated region
      $region37: #{basic_block_pallas.7} parent=31 // pred_check
        %p214 = pneg %p100
      $region38: #{basic_block_pallas.7} parent=31 // pred_check_branch
        %216 = sbr.rel (%p214) target = $region40
      $region39: #{basic_block_pallas.7} parent=31 // pred_region
        %s217 = smul.u32 32, %s12
        %p218 = scmp.lt.s32.totalorder %s217, 63
        %s219 = scalar_select %p218, %s217, 63
        %s220 = smul.addr %s219, 8
        %s221 = scalar_lea.vmem %s3, %s220
        %s222 = smul.u32 32, %s12
      $region40: #{basic_block_pallas.7} parent=31 // pred_fallthru
        _
    $region32: #{basic_block_pallas.7} parent=5 // pred_fallthru
      _
    %p223 = scmp.le.s32.totalorder 1, %s12
    %p224 = scmp.lt.s32.totalorder %s12, 3
    %p225 = pnand %p223, %p224
    %p226 = pneg %p225
    // Predicated region
    $region41: #{basic_block_pallas.7} parent=5 // pred_check
      _
    $region42: #{basic_block_pallas.7} parent=5 // pred_check_branch
      %228 = sbr.rel (%p225) target = $region44
    $region43: #{basic_block_pallas.7} parent=5 // pred_region
      %s229 = ssub.s32 %s12, 1
      %s230 = smul.u32 32, %s17
      %p231 = scmp.lt.s32.totalorder %s230, 63
      %s232 = scalar_select %p231, %s230, 63
      %s233 = smul.addr %s232, 8
      %s234 = scalar_lea.vmem %s0, %s233
      %p235 = pneg %p38
      %p236 = pneg %p35
      %p237 = pneg %p59
      %p238 = pneg %p56
      %p239 = pneg %p80
      %p240 = pneg %p77
      %s241 = smul.u32 32, %s17
      %p242 = scmp.lt.s32.totalorder %s241, 63
      %s243 = scalar_select %p242, %s241, 63
      %s244 = smul.addr %s243, 8
      %s245 = scalar_lea.vmem %s3, %s244
      %p246 = pneg %p106
      %p247 = pneg %p103
      %p248 = pneg %p127
      %p249 = pneg %p124
      %p250 = pneg %p148
      %p251 = pneg %p145
      %p252 = pneg %p174
      %p253 = pneg %p171
      %s254 = smul.u32 32, %s17
      %p255 = scmp.lt.s32.totalorder %s254, 63
      %s256 = scalar_select %p255, %s254, 63
      %s257 = smul.addr %s256, 8
      %s258 = scalar_lea.vmem %s6, %s257
      %s259 = smul.u32 32, %s17
      %p260 = scmp.lt.s32.totalorder %s259, 63
      %s261 = scalar_select %p260, %s259, 63
      %s262 = smul.addr %s261, 8
      %s263 = scalar_lea.vmem %s0, %s262
      %s264 = smul.u32 32, %s17
      %s265 = smul.u32 32, %s17
      %p266 = scmp.lt.s32.totalorder %s265, 63
      %s267 = scalar_select %p266, %s265, 63
      %s268 = smul.addr %s267, 8
      %s269 = scalar_lea.vmem %s3, %s268
      %s270 = smul.u32 32, %s17
      %s271 = smul.u32 32, %s17
      %p272 = scmp.lt.s32.totalorder %s271, 63
      %s273 = scalar_select %p272, %s271, 63
      %s274 = smul.addr %s273, 8
      %s275 = scalar_lea.vmem %s6, %s274
      %s276 = smul.u32 32, %s17
      %v277 = vld [vmem:[%s263] sm:$0xff]
      %v278 = vld [vmem:[%s263 + $0x8] sm:$0xff]
      %v279 = vld [vmem:[%s263 + $0x10] sm:$0xff]
      %v280 = vld [vmem:[%s263 + $0x18] sm:$0xff]
      %v281 = vld [vmem:[%s263 + $0x20] sm:$0xff]
      %v282 = vld [vmem:[%s263 + $0x28] sm:$0xff]
      %v283 = vld [vmem:[%s263 + $0x30] sm:$0xff]
      %v284 = vld [vmem:[%s263 + $0x38] sm:$0xff]
      %v285 = vld [vmem:[%s263 + $0x40] sm:$0xff]
      %v286 = vld [vmem:[%s263 + $0x48] sm:$0xff]
      %v287 = vld [vmem:[%s263 + $0x50] sm:$0xff]
      %v288 = vld [vmem:[%s263 + $0x58] sm:$0xff]
      %v289 = vld [vmem:[%s263 + $0x60] sm:$0xff]
      %v290 = vld [vmem:[%s263 + $0x68] sm:$0xff]
      %v291 = vld [vmem:[%s263 + $0x70] sm:$0xff]
      %v292 = vld [vmem:[%s263 + $0x78] sm:$0xff]
      %v293 = vld [vmem:[%s263 + $0x80] sm:$0xff]
      %v294 = vld [vmem:[%s263 + $0x88] sm:$0xff]
      %v295 = vld [vmem:[%s263 + $0x90] sm:$0xff]
      %v296 = vld [vmem:[%s263 + $0x98] sm:$0xff]
      %v297 = vld [vmem:[%s263 + $0xa0] sm:$0xff]
      %v298 = vld [vmem:[%s263 + $0xa8] sm:$0xff]
      %v299 = vld [vmem:[%s263 + $0xb0] sm:$0xff]
      %v300 = vld [vmem:[%s263 + $0xb8] sm:$0xff]
      %v301 = vld [vmem:[%s263 + $0xc0] sm:$0xff]
      %v302 = vld [vmem:[%s263 + $0xc8] sm:$0xff]
      %v303 = vld [vmem:[%s263 + $0xd0] sm:$0xff]
      %v304 = vld [vmem:[%s263 + $0xd8] sm:$0xff]
      %v305 = vld [vmem:[%s263 + $0xe0] sm:$0xff]
      %v306 = vld [vmem:[%s263 + $0xe8] sm:$0xff]
      %v307 = vld [vmem:[%s263 + $0xf0] sm:$0xff]
      %v308 = vld [vmem:[%s263 + $0xf8] sm:$0xff]
      %v309 = vld [vmem:[%s1] sm:$0x1]
      %v311 = vlaneseq
      %v312 = vshrl.u32 %v311, 7
      %v313 = vsub.s32 0, %v312
      %v314 = vrot.slane %v309, %v313
      %v316 = vmul.f32 %v277, %v314
      %v317 = vmul.f32 %v278, %v314
      %v318 = vmul.f32 %v279, %v314
      %v319 = vmul.f32 %v280, %v314
      %v320 = vmul.f32 %v281, %v314
      %v321 = vmul.f32 %v282, %v314
      %v322 = vmul.f32 %v283, %v314
      %v323 = vmul.f32 %v284, %v314
      %v324 = vmul.f32 %v285, %v314
      %v325 = vmul.f32 %v286, %v314
      %v326 = vmul.f32 %v287, %v314
      %v327 = vmul.f32 %v288, %v314
      %v328 = vmul.f32 %v289, %v314
      %v329 = vmul.f32 %v290, %v314
      %v330 = vmul.f32 %v291, %v314
      %v331 = vmul.f32 %v292, %v314
      %v332 = vmul.f32 %v293, %v314
      %v333 = vmul.f32 %v294, %v314
      %v334 = vmul.f32 %v295, %v314
      %v335 = vmul.f32 %v296, %v314
      %v336 = vmul.f32 %v297, %v314
      %v337 = vmul.f32 %v298, %v314
      %v338 = vmul.f32 %v299, %v314
      %v339 = vmul.f32 %v300, %v314
      %v340 = vmul.f32 %v301, %v314
      %v341 = vmul.f32 %v302, %v314
      %v342 = vmul.f32 %v303, %v314
      %v343 = vmul.f32 %v304, %v314
      %v344 = vmul.f32 %v305, %v314
      %v345 = vmul.f32 %v306, %v314
      %v346 = vmul.f32 %v307, %v314
      %v347 = vmul.f32 %v308, %v314
      %v348 = vld [vmem:[%s2] sm:$0x1]
      %v350 = vlaneseq
      %v351 = vshrl.u32 %v350, 7
      %v352 = vsub.s32 0, %v351
      %v353 = vrot.slane %v348, %v352
      %v355 = vadd.f32 %v316, %v353
      %v356 = vadd.f32 %v317, %v353
      %v357 = vadd.f32 %v318, %v353
      %v358 = vadd.f32 %v319, %v353
      %v359 = vadd.f32 %v320, %v353
      %v360 = vadd.f32 %v321, %v353
      %v361 = vadd.f32 %v322, %v353
      %v362 = vadd.f32 %v323, %v353
      %v363 = vadd.f32 %v324, %v353
      %v364 = vadd.f32 %v325, %v353
      %v365 = vadd.f32 %v326, %v353
      %v366 = vadd.f32 %v327, %v353
      %v367 = vadd.f32 %v328, %v353
      %v368 = vadd.f32 %v329, %v353
      %v369 = vadd.f32 %v330, %v353
      %v370 = vadd.f32 %v331, %v353
      %v371 = vadd.f32 %v332, %v353
      %v372 = vadd.f32 %v333, %v353
      %v373 = vadd.f32 %v334, %v353
      %v374 = vadd.f32 %v335, %v353
      %v375 = vadd.f32 %v336, %v353
      %v376 = vadd.f32 %v337, %v353
      %v377 = vadd.f32 %v338, %v353
      %v378 = vadd.f32 %v339, %v353
      %v379 = vadd.f32 %v340, %v353
      %v380 = vadd.f32 %v341, %v353
      %v381 = vadd.f32 %v342, %v353
      %v382 = vadd.f32 %v343, %v353
      %v383 = vadd.f32 %v344, %v353
      %v384 = vadd.f32 %v345, %v353
      %v385 = vadd.f32 %v346, %v353
      %v386 = vadd.f32 %v347, %v353
      %v387 = vld [vmem:[%s269] sm:$0xff]
      %v388 = vld [vmem:[%s269 + $0x8] sm:$0xff]
      %v389 = vld [vmem:[%s269 + $0x10] sm:$0xff]
      %v390 = vld [vmem:[%s269 + $0x18] sm:$0xff]
      %v391 = vld [vmem:[%s269 + $0x20] sm:$0xff]
      %v392 = vld [vmem:[%s269 + $0x28] sm:$0xff]
      %v393 = vld [vmem:[%s269 + $0x30] sm:$0xff]
      %v394 = vld [vmem:[%s269 + $0x38] sm:$0xff]
      %v395 = vld [vmem:[%s269 + $0x40] sm:$0xff]
      %v396 = vld [vmem:[%s269 + $0x48] sm:$0xff]
      %v397 = vld [vmem:[%s269 + $0x50] sm:$0xff]
      %v398 = vld [vmem:[%s269 + $0x58] sm:$0xff]
      %v399 = vld [vmem:[%s269 + $0x60] sm:$0xff]
      %v400 = vld [vmem:[%s269 + $0x68] sm:$0xff]
      %v401 = vld [vmem:[%s269 + $0x70] sm:$0xff]
      %v402 = vld [vmem:[%s269 + $0x78] sm:$0xff]
      %v403 = vld [vmem:[%s269 + $0x80] sm:$0xff]
      %v404 = vld [vmem:[%s269 + $0x88] sm:$0xff]
      %v405 = vld [vmem:[%s269 + $0x90] sm:$0xff]
      %v406 = vld [vmem:[%s269 + $0x98] sm:$0xff]
      %v407 = vld [vmem:[%s269 + $0xa0] sm:$0xff]
      %v408 = vld [vmem:[%s269 + $0xa8] sm:$0xff]
      %v409 = vld [vmem:[%s269 + $0xb0] sm:$0xff]
      %v410 = vld [vmem:[%s269 + $0xb8] sm:$0xff]
      %v411 = vld [vmem:[%s269 + $0xc0] sm:$0xff]
      %v412 = vld [vmem:[%s269 + $0xc8] sm:$0xff]
      %v413 = vld [vmem:[%s269 + $0xd0] sm:$0xff]
      %v414 = vld [vmem:[%s269 + $0xd8] sm:$0xff]
      %v415 = vld [vmem:[%s269 + $0xe0] sm:$0xff]
      %v416 = vld [vmem:[%s269 + $0xe8] sm:$0xff]
      %v417 = vld [vmem:[%s269 + $0xf0] sm:$0xff]
      %v418 = vld [vmem:[%s269 + $0xf8] sm:$0xff]
      %v419 = vld [vmem:[%s4] sm:$0x1]
      %v421 = vlaneseq
      %v422 = vshrl.u32 %v421, 7
      %v423 = vsub.s32 0, %v422
      %v424 = vrot.slane %v419, %v423
      %v426 = vmul.f32 %v387, %v424
      %v427 = vmul.f32 %v388, %v424
      %v428 = vmul.f32 %v389, %v424
      %v429 = vmul.f32 %v390, %v424
      %v430 = vmul.f32 %v391, %v424
      %v431 = vmul.f32 %v392, %v424
      %v432 = vmul.f32 %v393, %v424
      %v433 = vmul.f32 %v394, %v424
      %v434 = vmul.f32 %v395, %v424
      %v435 = vmul.f32 %v396, %v424
      %v436 = vmul.f32 %v397, %v424
      %v437 = vmul.f32 %v398, %v424
      %v438 = vmul.f32 %v399, %v424
      %v439 = vmul.f32 %v400, %v424
      %v440 = vmul.f32 %v401, %v424
      %v441 = vmul.f32 %v402, %v424
      %v442 = vmul.f32 %v403, %v424
      %v443 = vmul.f32 %v404, %v424
      %v444 = vmul.f32 %v405, %v424
      %v445 = vmul.f32 %v406, %v424
      %v446 = vmul.f32 %v407, %v424
      %v447 = vmul.f32 %v408, %v424
      %v448 = vmul.f32 %v409, %v424
      %v449 = vmul.f32 %v410, %v424
      %v450 = vmul.f32 %v411, %v424
      %v451 = vmul.f32 %v412, %v424
      %v452 = vmul.f32 %v413, %v424
      %v453 = vmul.f32 %v414, %v424
      %v454 = vmul.f32 %v415, %v424
      %v455 = vmul.f32 %v416, %v424
      %v456 = vmul.f32 %v417, %v424
      %v457 = vmul.f32 %v418, %v424
      %v458 = vld [vmem:[%s5] sm:$0x1]
      %v460 = vlaneseq
      %v461 = vshrl.u32 %v460, 7
      %v462 = vsub.s32 0, %v461
      %v463 = vrot.slane %v458, %v462
      %v465 = vadd.f32 %v426, %v463
      %v466 = vadd.f32 %v427, %v463
      %v467 = vadd.f32 %v428, %v463
      %v468 = vadd.f32 %v429, %v463
      %v469 = vadd.f32 %v430, %v463
      %v470 = vadd.f32 %v431, %v463
      %v471 = vadd.f32 %v432, %v463
      %v472 = vadd.f32 %v433, %v463
      %v473 = vadd.f32 %v434, %v463
      %v474 = vadd.f32 %v435, %v463
      %v475 = vadd.f32 %v436, %v463
      %v476 = vadd.f32 %v437, %v463
      %v477 = vadd.f32 %v438, %v463
      %v478 = vadd.f32 %v439, %v463
      %v479 = vadd.f32 %v440, %v463
      %v480 = vadd.f32 %v441, %v463
      %v481 = vadd.f32 %v442, %v463
      %v482 = vadd.f32 %v443, %v463
      %v483 = vadd.f32 %v444, %v463
      %v484 = vadd.f32 %v445, %v463
      %v485 = vadd.f32 %v446, %v463
      %v486 = vadd.f32 %v447, %v463
      %v487 = vadd.f32 %v448, %v463
      %v488 = vadd.f32 %v449, %v463
      %v489 = vadd.f32 %v450, %v463
      %v490 = vadd.f32 %v451, %v463
      %v491 = vadd.f32 %v452, %v463
      %v492 = vadd.f32 %v453, %v463
      %v493 = vadd.f32 %v454, %v463
      %v494 = vadd.f32 %v455, %v463
      %v495 = vadd.f32 %v456, %v463
      %v496 = vadd.f32 %v457, %v463
      %v497 = vadd.f32 %v355, %v465
      %v498 = vadd.f32 %v356, %v466
      %v499 = vadd.f32 %v357, %v467
      %v500 = vadd.f32 %v358, %v468
      %v501 = vadd.f32 %v359, %v469
      %v502 = vadd.f32 %v360, %v470
      %v503 = vadd.f32 %v361, %v471
      %v504 = vadd.f32 %v362, %v472
      %v505 = vadd.f32 %v363, %v473
      %v506 = vadd.f32 %v364, %v474
      %v507 = vadd.f32 %v365, %v475
      %v508 = vadd.f32 %v366, %v476
      %v509 = vadd.f32 %v367, %v477
      %v510 = vadd.f32 %v368, %v478
      %v511 = vadd.f32 %v369, %v479
      %v512 = vadd.f32 %v370, %v480
      %v513 = vadd.f32 %v371, %v481
      %v514 = vadd.f32 %v372, %v482
      %v515 = vadd.f32 %v373, %v483
      %v516 = vadd.f32 %v374, %v484
      %v517 = vadd.f32 %v375, %v485
      %v518 = vadd.f32 %v376, %v486
      %v519 = vadd.f32 %v377, %v487
      %v520 = vadd.f32 %v378, %v488
      %v521 = vadd.f32 %v379, %v489
      %v522 = vadd.f32 %v380, %v490
      %v523 = vadd.f32 %v381, %v491
      %v524 = vadd.f32 %v382, %v492
      %v525 = vadd.f32 %v383, %v493
      %v526 = vadd.f32 %v384, %v494
      %v527 = vadd.f32 %v385, %v495
      %v528 = vadd.f32 %v386, %v496
      %v529 = vmax.f32 %v497, 0.0
      %v530 = vmax.f32 %v498, 0.0
      %v531 = vmax.f32 %v499, 0.0
      %v532 = vmax.f32 %v500, 0.0
      %v533 = vmax.f32 %v501, 0.0
      %v534 = vmax.f32 %v502, 0.0
      %v535 = vmax.f32 %v503, 0.0
      %v536 = vmax.f32 %v504, 0.0
      %v537 = vmax.f32 %v505, 0.0
      %v538 = vmax.f32 %v506, 0.0
      %v539 = vmax.f32 %v507, 0.0
      %v540 = vmax.f32 %v508, 0.0
      %v541 = vmax.f32 %v509, 0.0
      %v542 = vmax.f32 %v510, 0.0
      %v543 = vmax.f32 %v511, 0.0
      %v544 = vmax.f32 %v512, 0.0
      %v545 = vmax.f32 %v513, 0.0
      %v546 = vmax.f32 %v514, 0.0
      %v547 = vmax.f32 %v515, 0.0
      %v548 = vmax.f32 %v516, 0.0
      %v549 = vmax.f32 %v517, 0.0
      %v550 = vmax.f32 %v518, 0.0
      %v551 = vmax.f32 %v519, 0.0
      %v552 = vmax.f32 %v520, 0.0
      %v553 = vmax.f32 %v521, 0.0
      %v554 = vmax.f32 %v522, 0.0
      %v555 = vmax.f32 %v523, 0.0
      %v556 = vmax.f32 %v524, 0.0
      %v557 = vmax.f32 %v525, 0.0
      %v558 = vmax.f32 %v526, 0.0
      %v559 = vmax.f32 %v527, 0.0
      %v560 = vmax.f32 %v528, 0.0
      %561 = vst [vmem:[%s275] sm:$0xff] %v529
      %562 = vst [vmem:[%s275 + $0x8] sm:$0xff] %v530
      %563 = vst [vmem:[%s275 + $0x10] sm:$0xff] %v531
      %564 = vst [vmem:[%s275 + $0x18] sm:$0xff] %v532
      %565 = vst [vmem:[%s275 + $0x20] sm:$0xff] %v533
      %566 = vst [vmem:[%s275 + $0x28] sm:$0xff] %v534
      %567 = vst [vmem:[%s275 + $0x30] sm:$0xff] %v535
      %568 = vst [vmem:[%s275 + $0x38] sm:$0xff] %v536
      %569 = vst [vmem:[%s275 + $0x40] sm:$0xff] %v537
      %570 = vst [vmem:[%s275 + $0x48] sm:$0xff] %v538
      %571 = vst [vmem:[%s275 + $0x50] sm:$0xff] %v539
      %572 = vst [vmem:[%s275 + $0x58] sm:$0xff] %v540
      %573 = vst [vmem:[%s275 + $0x60] sm:$0xff] %v541
      %574 = vst [vmem:[%s275 + $0x68] sm:$0xff] %v542
      %575 = vst [vmem:[%s275 + $0x70] sm:$0xff] %v543
      %576 = vst [vmem:[%s275 + $0x78] sm:$0xff] %v544
      %577 = vst [vmem:[%s275 + $0x80] sm:$0xff] %v545
      %578 = vst [vmem:[%s275 + $0x88] sm:$0xff] %v546
      %579 = vst [vmem:[%s275 + $0x90] sm:$0xff] %v547
      %580 = vst [vmem:[%s275 + $0x98] sm:$0xff] %v548
      %581 = vst [vmem:[%s275 + $0xa0] sm:$0xff] %v549
      %582 = vst [vmem:[%s275 + $0xa8] sm:$0xff] %v550
      %583 = vst [vmem:[%s275 + $0xb0] sm:$0xff] %v551
      %584 = vst [vmem:[%s275 + $0xb8] sm:$0xff] %v552
      %585 = vst [vmem:[%s275 + $0xc0] sm:$0xff] %v553
      %586 = vst [vmem:[%s275 + $0xc8] sm:$0xff] %v554
      %587 = vst [vmem:[%s275 + $0xd0] sm:$0xff] %v555
      %588 = vst [vmem:[%s275 + $0xd8] sm:$0xff] %v556
      %589 = vst [vmem:[%s275 + $0xe0] sm:$0xff] %v557
      %590 = vst [vmem:[%s275 + $0xe8] sm:$0xff] %v558
      %591 = vst [vmem:[%s275 + $0xf0] sm:$0xff] %v559
      %592 = vst [vmem:[%s275 + $0xf8] sm:$0xff] %v560
      %s593 = smul.u32 32, %s17
      %p594 = scmp.lt.s32.totalorder %s593, 63
      %s595 = scalar_select %p594, %s593, 63
      %s596 = smul.addr %s595, 8
      %s597 = scalar_lea.vmem %s6, %s596
      // Predicated region
      $region45: #{basic_block_pallas.7} parent=43 // pred_check
        %p598 = pneg %p171
      $region46: #{basic_block_pallas.7} parent=43 // pred_check_branch
        %600 = sbr.rel (%p598) target = $region48
      $region47: #{basic_block_pallas.7} parent=43 // pred_region
        %s601 = smul.u32 32, %s17
      $region48: #{basic_block_pallas.7} parent=43 // pred_fallthru
        _
    $region44: #{basic_block_pallas.7} parent=5 // pred_fallthru
      _
    %p602 = scmp.le.s32.totalorder 2, %s12
    // Predicated region
    $region49: #{basic_block_pallas.7} parent=5 // pred_check
      %p603 = pneg %p602
    $region50: #{basic_block_pallas.7} parent=5 // pred_check_branch
      %605 = sbr.rel (%p603) target = $region52
    $region51: #{basic_block_pallas.7} parent=5 // pred_region
      %s606 = ssub.s32 %s12, 2
      // Predicated region
      $region53: #{basic_block_pallas.7} parent=51 // pred_check
        %p607 = pneg %p177
      $region54: #{basic_block_pallas.7} parent=51 // pred_check_branch
        %609 = sbr.rel (%p607) target = $region56
      $region55: #{basic_block_pallas.7} parent=51 // pred_region
        %s610 = smul.u32 32, %s18
        %p611 = scmp.lt.s32.totalorder %s610, 63
        %s612 = scalar_select %p611, %s610, 63
        %s613 = smul.addr %s612, 8
        %s614 = scalar_lea.vmem %s6, %s613
      $region56: #{basic_block_pallas.7} parent=51 // pred_fallthru
        _
    $region52: #{basic_block_pallas.7} parent=5 // pred_fallthru
      _
  $region6: #{basic_block_pallas.7} parent=0 // loop_footer
    %s16 = sadd.s32 1, %s12
  $region7: #{basic_block_pallas.7} parent=0 // loop_footer_branch
    %11 = sbr.rel target = $region3
  $region8: #{basic_block_pallas.7} parent=0 // loop_exit
    _

</llo_original>
